<compile_context>
chip_gen: v7x
topology: tpu7x:2x2x1
jax: 0.10.0
libtpu: 0.0.40
codegen_flags: <defaults>
</compile_context>

<pallas_src>
import jax
import jax.numpy as jnp
from jax import lax
from jax.experimental import pallas as pl
from jax.experimental.pallas import tpu as pltpu


def softmax_loss(x, W, labels, *, compute_dtype=None):
    """Pallas implementation of the `softmax` module forward pass.

    Args:
      x: [N, D0] float32 input features.
      W: list of weight matrices [D0,H1], [H1,H2], ..., [Hk,C].
      labels: [N] int32 class ids; the PyTorch module's one-hot `y` is
        assumed to equal one_hot(labels).
      compute_dtype: optional (e.g. jnp.bfloat16) — stream x/W at that dtype
        (f32 accumulation / f32 softmax math).  Slight drift vs f32 reference.

    Returns:
      (sigma, L2) float32 scalars, matching the PyTorch module.
    """
    n_layers = len(W)
    assert n_layers >= 1
    N, D0 = x.shape
    C = W[-1].shape[1]
    assert labels.shape == (N,)

    W = list(W)
    if compute_dtype is not None:
        x = x.astype(compute_dtype)
        W = [w.astype(compute_dtype) for w in W]

    labels_row = labels.astype(jnp.int32).reshape(1, N)   # lane-major labels

    # ---- batch tiling ----------------------------------------------------
    row_bytes = D0 * x.dtype.itemsize
    # Keep the double-buffered x stream around <= ~16 MiB; 512-1024-row tiles
    # already sit at ~85%+ of the HBM roofline.
    tn = min(1024, max(128, (16 * 1024 * 1024) // (2 * row_bytes)))
    tn = (tn // 128) * 128            # lane/sublane friendly when tn < N
    if tn >= N:
        tn = N                        # single full block (full-dim block)
    grid_n = pl.cdiv(N, tn)
    needs_mask = (N % tn) != 0        # ragged last tile -> mask rows in-kernel

    # ---- VMEM budget -------------------------------------------------------
    weight_bytes = sum(int(w.size) * w.dtype.itemsize for w in W)
    stream_bytes = 2 * tn * row_bytes + 2 * 8 * tn * 4    # x + labels buffers
    vmem_limit = int(min(64 * 1024 * 1024,
                         max(32 * 1024 * 1024,
                             2 * (weight_bytes + stream_bytes))))
    # TODO(synk): derive tn / vmem_limit per generation via pltpu.get_tpu_info()
    # (v7x: 64 MiB physical VMEM; v5e: 16 MiB scoped default, ~820 GB/s HBM).

    # ---- kernel ------------------------------------------------------------
    def kernel(x_ref, *rest):
        w_refs = rest[:n_layers]
        lab_ref = rest[n_layers]
        sigma_ref = rest[n_layers + 1]
        l2_ref = rest[n_layers + 2]

        i = pl.program_id(0)

        # Load each (resident) weight exactly once.
        w_mats = [w_ref[...] for w_ref in w_refs]
        w0 = w_mats[0]

        # MLP: sigmoid hidden layers + final linear layer (MXU, f32 accum).
        h = x_ref[...]
        for w in w_mats[:-1]:
            h = jax.nn.sigmoid(jnp.dot(h.astype(w.dtype), w,
                                       preferred_element_type=jnp.float32))
        logits = jnp.dot(h.astype(w_mats[-1].dtype), w_mats[-1],
                         preferred_element_type=jnp.float32)        # [tn, C]

        if needs_mask:
            # Ragged last tile: zero invalid rows *before* any transcendental
            # so garbage / NaN from the padded block never propagates.
            rem = N - i * tn
            row_id = jax.lax.broadcasted_iota(jnp.int32, (tn, C), 0)
            logits = jnp.where(row_id < rem, logits, 0.0)

        # Stabilized log-sum-exp; row reductions stay 2-D ([tn, 1]).
        y_max = jnp.max(logits, axis=1, keepdims=True)
        shifted = logits - y_max                                     # [tn, C]
        lse = jnp.log(jnp.sum(jnp.exp(shifted), axis=1, keepdims=True))  # [tn,1]
        if needs_mask:
            lse = jnp.where(row_id[:, 0:1] < rem, lse, 0.0)
        lse_total = jnp.sum(lse)

        # Label term with labels kept lane-major (no lane<->sublane relayout):
        # build the transposed one-hot (classes on sublanes, tile rows on
        # lanes), contract it with `shifted` on the MXU and take the diagonal
        # of the (C, C) result:  sum_c M[c, c] == sum_r shifted[r, labels[r]].
        # Invalid (masked) rows have shifted == 0 so they contribute nothing.
        labels_vec = lab_ref[...]                                    # (1, tn)
        cls_id = jax.lax.broadcasted_iota(jnp.int32, (C, tn), 0)
        onehot_t = (cls_id == labels_vec).astype(jnp.float32)        # (C, tn)
        m = jnp.dot(onehot_t, shifted,
                    preferred_element_type=jnp.float32,
                    precision=lax.Precision.HIGHEST)                 # (C, C)
        diag = (jax.lax.broadcasted_iota(jnp.int32, (C, C), 0)
                == jax.lax.broadcasted_iota(jnp.int32, (C, C), 1))
        dot_y_total = jnp.sum(jnp.where(diag, m, 0.0))

        # Per-program partial -> own (1,1,1) block: lets the N-grid be
        # "parallel" (both v7x TensorCores); wrapper does the final sum.
        sigma_ref[...] = jnp.full((1, 1, 1), lse_total - dot_y_total,
                                  jnp.float32)

        # L2 regularizer on W[0]: computed once by program 0, zeros elsewhere.
        l2_ref[...] = jnp.zeros((1, 1, 1), jnp.float32)

        @pl.when(i == 0)
        def _():
            w0f = w0.astype(jnp.float32)
            l2_ref[...] = jnp.full((1, 1, 1), jnp.sum(w0f * w0f), jnp.float32)

    # ---- pallas_call -------------------------------------------------------
    out_shape = (
        jax.ShapeDtypeStruct((grid_n, 1, 1), jnp.float32),
        jax.ShapeDtypeStruct((grid_n, 1, 1), jnp.float32),
    )
    out_specs = (
        pl.BlockSpec((1, 1, 1), lambda i: (i, 0, 0)),
        pl.BlockSpec((1, 1, 1), lambda i: (i, 0, 0)),
    )
    compiler_params = pltpu.CompilerParams(
        dimension_semantics=("parallel",),
        vmem_limit_bytes=vmem_limit,
    )

    def make_call(single_buffer_weights):
        x_spec = pl.BlockSpec((tn, D0), lambda i: (i, 0))        # streamed
        if single_buffer_weights:
            # Constant index_map -> never re-fetched; one buffer is enough.
            w_specs = [pl.BlockSpec(w.shape, lambda i: (0, 0),
                                    pipeline_mode=pl.Buffered(1)) for w in W]
        else:
            w_specs = [pl.BlockSpec(w.shape, lambda i: (0, 0)) for w in W]
        lab_spec = pl.BlockSpec((1, tn), lambda i: (0, i))       # lane-major
        grid_spec = pltpu.PrefetchScalarGridSpec(
            num_scalar_prefetch=0,
            grid=(grid_n,),
            in_specs=[x_spec, *w_specs, lab_spec],
            out_specs=out_specs,
        )
        return pl.pallas_call(kernel, grid_spec=grid_spec,
                              out_shape=out_shape,
                              compiler_params=compiler_params)

    try:
        sigma_parts, l2_parts = make_call(True)(x, *W, labels_row)
    except Exception:
        # TODO(synk): pl.Buffered(1) (single-buffered resident weights) not
        # accepted by this Pallas build; fall back to default double buffering.
        sigma_parts, l2_parts = make_call(False)(x, *W, labels_row)

    sigma = jnp.sum(sigma_parts[:, 0, 0])
    l2 = l2_parts[0, 0, 0]
    return sigma, l2


def _reference(x, W, y):
    Y = x
    for i in range(len(W) - 1):
        Y = jax.nn.sigmoid(jnp.matmul(Y, W[i]))
    Y = jnp.matmul(Y, W[-1])
    Y = Y - jnp.max(Y, axis=1, keepdims=True)
    tmp_a = jnp.log(jnp.sum(jnp.exp(Y), axis=1))
    tmp_b = jnp.sum(Y * y, axis=1)
    sigma = jnp.sum(tmp_a - tmp_b)
    L2 = jnp.sum(W[0] * W[0])
    return sigma, L2


if __name__ == "__main__":
    # Small deterministic shapes: batch=8, features=32, hiddens=32/32, classes=16.
    N, D0, H1, H2, C = 8, 32, 32, 32, 16

    key = jax.random.PRNGKey(0)
    kx, kw0, kw1, kw2, ky, kx2, ky2 = jax.random.split(key, 7)

    x = jax.random.normal(kx, (N, D0), dtype=jnp.float32)
    W = [
        0.1 * jax.random.normal(kw0, (D0, H1), dtype=jnp.float32),
        0.1 * jax.random.normal(kw1, (H1, H2), dtype=jnp.float32),
        0.1 * jax.random.normal(kw2, (H2, C), dtype=jnp.float32),
    ]
    labels = jax.random.randint(ky, (N,), 0, C, dtype=jnp.int32)

    # 1) tiny single-tile path, f32
    sigma, l2 = jax.block_until_ready(softmax_loss(x, W, labels))
    y = jax.nn.one_hot(labels, C, dtype=jnp.float32)
    sigma_ref, l2_ref = _reference(x, W, y)
    assert jnp.allclose(sigma, sigma_ref, rtol=1e-4, atol=1e-3), (sigma, sigma_ref)
    assert jnp.allclose(l2, l2_ref, rtol=1e-5, atol=1e-5), (l2, l2_ref)

    # 2) multi-tile + ragged last tile (exercises masked streaming + parallel grid)
    N2 = 2500
    x2 = jax.random.normal(kx2, (N2, D0), dtype=jnp.float32)
    labels2 = jax.random.randint(ky2, (N2,), 0, C, dtype=jnp.int32)
    sigma2, l22 = jax.block_until_ready(softmax_loss(x2, W, labels2))
    y2 = jax.nn.one_hot(labels2, C, dtype=jnp.float32)
    sigma2_ref, l22_ref = _reference(x2, W, y2)
    assert jnp.allclose(sigma2, sigma2_ref, rtol=1e-4, atol=5e-2), (sigma2, sigma2_ref)
    assert jnp.allclose(l22, l22_ref, rtol=1e-5, atol=1e-5), (l22, l22_ref)

    # 3) opt-in bf16 streaming path (halves HBM bytes; looser tolerance)
    sigma_bf, l2_bf = jax.block_until_ready(
        softmax_loss(x2, W, labels2, compute_dtype=jnp.bfloat16))
    assert jnp.allclose(sigma_bf, sigma2_ref, rtol=5e-2, atol=1.0), (sigma_bf, sigma2_ref)
    assert jnp.allclose(l2_bf, l22_ref, rtol=3e-2, atol=1e-3), (l2_bf, l22_ref)

    print("KERNEL_OK")
</pallas_src>

<mosaic_0001>
module attributes {stable_mosaic.version = 11 : i64} {
  func.func @kernel(%arg0: i32, %arg1: memref<8x32xf32, #tpu.memory_space<vmem>>, %arg2: memref<32x32xf32, #tpu.memory_space<vmem>>, %arg3: memref<32x32xf32, #tpu.memory_space<vmem>>, %arg4: memref<32x16xf32, #tpu.memory_space<vmem>>, %arg5: memref<1x8xi32, #tpu.memory_space<vmem>>, %arg6: memref<1x1x1xf32, #tpu.memory_space<vmem>>, %arg7: memref<1x1x1xf32, #tpu.memory_space<vmem>>) attributes {dimension_semantics = [#tpu.dimension_semantics<parallel>], iteration_bounds = array<i64: 1>, scalar_prefetch = 0 : i64, scratch_operands = 0 : i64, tpu.core_type = #tpu.core_type<tc>, window_params = [{transform_indices = @transform_0, window_bounds = array<i64: 8, 32>}, {pipeline_mode = #tpu.pipeline_mode<synchronous>, transform_indices = @transform_1, window_bounds = array<i64: 32, 32>}, {pipeline_mode = #tpu.pipeline_mode<synchronous>, transform_indices = @transform_2, window_bounds = array<i64: 32, 32>}, {pipeline_mode = #tpu.pipeline_mode<synchronous>, transform_indices = @transform_3, window_bounds = array<i64: 32, 16>}, {transform_indices = @transform_4, window_bounds = array<i64: 1, 8>}, {transform_indices = @transform_5, window_bounds = array<i64: 1, 1, 1>}, {transform_indices = @transform_6, window_bounds = array<i64: 1, 1, 1>}]} {
    %c0 = arith.constant 0 : index
    %c0_0 = arith.constant 0 : index
    %0 = vector.load %arg2[%c0, %c0_0] : memref<32x32xf32, #tpu.memory_space<vmem>>, vector<32x32xf32>
    %c0_1 = arith.constant 0 : index
    %c0_2 = arith.constant 0 : index
    %1 = vector.load %arg3[%c0_1, %c0_2] : memref<32x32xf32, #tpu.memory_space<vmem>>, vector<32x32xf32>
    %c0_3 = arith.constant 0 : index
    %c0_4 = arith.constant 0 : index
    %2 = vector.load %arg4[%c0_3, %c0_4] : memref<32x16xf32, #tpu.memory_space<vmem>>, vector<32x16xf32>
    %c0_5 = arith.constant 0 : index
    %c0_6 = arith.constant 0 : index
    %3 = vector.load %arg1[%c0_5, %c0_6] : memref<8x32xf32, #tpu.memory_space<vmem>>, vector<8x32xf32>
    %cst = arith.constant dense<0.000000e+00> : vector<8x32xf32>
    %4 = tpu.matmul %3, %0, %cst {dimension_numbers = #tpu.dot_dimension_numbers<[1], [0], [0], [1], [0, 0, 1, 1], [], []>} : vector<8x32xf32>, vector<32x32xf32>, vector<8x32xf32> -> vector<8x32xf32>
    %5 = arith.negf %4 : vector<8x32xf32>
    %6 = math.exp %5 : vector<8x32xf32>
    %cst_7 = arith.constant 1.000000e+00 : f32
    %7 = vector.broadcast %cst_7 : f32 to vector<8x32xf32>
    %8 = arith.addf %7, %6 : vector<8x32xf32>
    %9 = arith.divf %7, %8 : vector<8x32xf32>
    %cst_8 = arith.constant dense<0.000000e+00> : vector<8x32xf32>
    %10 = tpu.matmul %9, %1, %cst_8 {dimension_numbers = #tpu.dot_dimension_numbers<[1], [0], [0], [1], [0, 0, 1, 1], [], []>} : vector<8x32xf32>, vector<32x32xf32>, vector<8x32xf32> -> vector<8x32xf32>
    %11 = arith.negf %10 : vector<8x32xf32>
    %12 = math.exp %11 : vector<8x32xf32>
    %cst_9 = arith.constant 1.000000e+00 : f32
    %13 = vector.broadcast %cst_9 : f32 to vector<8x32xf32>
    %14 = arith.addf %13, %12 : vector<8x32xf32>
    %15 = arith.divf %13, %14 : vector<8x32xf32>
    %cst_10 = arith.constant dense<0.000000e+00> : vector<8x16xf32>
    %16 = tpu.matmul %15, %2, %cst_10 {dimension_numbers = #tpu.dot_dimension_numbers<[1], [0], [0], [1], [0, 0, 1, 1], [], []>} : vector<8x32xf32>, vector<32x16xf32>, vector<8x16xf32> -> vector<8x16xf32>
    %cst_11 = arith.constant dense<0xFF800000> : vector<8xf32>
    %17 = vector.multi_reduction <maximumf>, %16, %cst_11 [1] : vector<8x16xf32> to vector<8xf32>
    %18 = vector.shape_cast %17 : vector<8xf32> to vector<8x1xf32>
    %19 = vector.broadcast %18 : vector<8x1xf32> to vector<8x16xf32>
    %20 = arith.subf %16, %19 : vector<8x16xf32>
    %21 = math.exp %20 : vector<8x16xf32>
    %cst_12 = arith.constant dense<0.000000e+00> : vector<8xf32>
    %22 = vector.multi_reduction <add>, %21, %cst_12 [1] : vector<8x16xf32> to vector<8xf32>
    %23 = vector.shape_cast %22 : vector<8xf32> to vector<8x1xf32>
    %24 = math.log %23 : vector<8x1xf32>
    %25 = vector.shape_cast %24 : vector<8x1xf32> to vector<1x8x1xf32>
    %cst_13 = arith.constant dense<0.000000e+00> : vector<1xf32>
    %26 = vector.multi_reduction <add>, %25, %cst_13 [1, 2] : vector<1x8x1xf32> to vector<1xf32>
    %27 = vector.shape_cast %26 : vector<1xf32> to vector<1x1x1xf32>
    %28 = vector.extract %27[0, 0, 0] : f32 from vector<1x1x1xf32>
    %c0_14 = arith.constant 0 : index
    %c0_15 = arith.constant 0 : index
    %29 = vector.load %arg5[%c0_14, %c0_15] : memref<1x8xi32, #tpu.memory_space<vmem>>, vector<1x8xi32>
    %30 = tpu.iota {dimensions = array<i32: 0>} : vector<16x8xi32>
    %31 = vector.broadcast %29 : vector<1x8xi32> to vector<16x8xi32>
    %32 = arith.cmpi eq, %30, %31 : vector<16x8xi32>
    %33 = arith.extui %32 : vector<16x8xi1> to vector<16x8xi32>
    %34 = arith.sitofp %33 : vector<16x8xi32> to vector<16x8xf32>
    %cst_16 = arith.constant dense<0.000000e+00> : vector<16x16xf32>
    %35 = tpu.matmul %34, %20, %cst_16 {dimension_numbers = #tpu.dot_dimension_numbers<[1], [0], [0], [1], [0, 0, 1, 1], [], []>, precision = #tpu.contract_precision<fp32>} : vector<16x8xf32>, vector<8x16xf32>, vector<16x16xf32> -> vector<16x16xf32>
    %36 = tpu.iota {dimensions = array<i32: 0>} : vector<16x16xi32>
    %37 = tpu.iota {dimensions = array<i32: 1>} : vector<16x16xi32>
    %38 = arith.cmpi eq, %36, %37 : vector<16x16xi32>
    %cst_17 = arith.constant 0.000000e+00 : f32
    %39 = vector.broadcast %cst_17 : f32 to vector<16x16xf32>
    %40 = arith.select %38, %35, %39 : vector<16x16xi1>, vector<16x16xf32>
    %41 = vector.shape_cast %40 : vector<16x16xf32> to vector<1x16x16xf32>
    %cst_18 = arith.constant dense<0.000000e+00> : vector<1xf32>
    %42 = vector.multi_reduction <add>, %41, %cst_18 [1, 2] : vector<1x16x16xf32> to vector<1xf32>
    %43 = vector.shape_cast %42 : vector<1xf32> to vector<1x1x1xf32>
    %44 = vector.extract %43[0, 0, 0] : f32 from vector<1x1x1xf32>
    %45 = arith.subf %28, %44 : f32
    %46 = vector.broadcast %45 : f32 to vector<1x1x1xf32>
    %c0_19 = arith.constant 0 : index
    %c0_20 = arith.constant 0 : index
    %c0_21 = arith.constant 0 : index
    %47 = vector.load %arg6[%c0_19, %c0_20, %c0_21] : memref<1x1x1xf32, #tpu.memory_space<vmem>>, vector<1x1x1xf32>
    tpu.vector_store %arg6[%c0_19, %c0_20, %c0_21], %46 {strides = array<i32>} : memref<1x1x1xf32, #tpu.memory_space<vmem>>, vector<1x1x1xf32>,
    %cst_22 = arith.constant 0.000000e+00 : f32
    %48 = vector.broadcast %cst_22 : f32 to vector<1x1x1xf32>
    %c0_23 = arith.constant 0 : index
    %c0_24 = arith.constant 0 : index
    %c0_25 = arith.constant 0 : index
    %49 = vector.load %arg7[%c0_23, %c0_24, %c0_25] : memref<1x1x1xf32, #tpu.memory_space<vmem>>, vector<1x1x1xf32>
    tpu.vector_store %arg7[%c0_23, %c0_24, %c0_25], %48 {strides = array<i32>} : memref<1x1x1xf32, #tpu.memory_space<vmem>>, vector<1x1x1xf32>,
    %c0_i32 = arith.constant 0 : i32
    %50 = arith.cmpi eq, %arg0, %c0_i32 : i32
    %51 = arith.extui %50 : i1 to i32
    %c0_i32_26 = arith.constant 0 : i32
    %52 = arith.cmpi ne, %51, %c0_i32_26 : i32
    scf.if %52 {
      %53 = arith.mulf %0, %0 : vector<32x32xf32>
      %54 = vector.shape_cast %53 : vector<32x32xf32> to vector<1x32x32xf32>
      %cst_27 = arith.constant dense<0.000000e+00> : vector<1xf32>
      %55 = vector.multi_reduction <add>, %54, %cst_27 [1, 2] : vector<1x32x32xf32> to vector<1xf32>
      %56 = vector.shape_cast %55 : vector<1xf32> to vector<1x1x1xf32>
      %57 = vector.extract %56[0, 0, 0] : f32 from vector<1x1x1xf32>
      %58 = vector.broadcast %57 : f32 to vector<1x1x1xf32>
      %c0_28 = arith.constant 0 : index
      %c0_29 = arith.constant 0 : index
      %c0_30 = arith.constant 0 : index
      %59 = vector.load %arg7[%c0_28, %c0_29, %c0_30] : memref<1x1x1xf32, #tpu.memory_space<vmem>>, vector<1x1x1xf32>
      tpu.vector_store %arg7[%c0_28, %c0_29, %c0_30], %58 {strides = array<i32>} : memref<1x1x1xf32, #tpu.memory_space<vmem>>, vector<1x1x1xf32>,
    } else {
    }
    return
  }
  func.func @transform_0(%arg0: i32) -> (i32, i32) {
    %c0_i32 = arith.constant 0 : i32
    %c0_i32_0 = arith.constant 0 : i32
    return %arg0, %c0_i32 : i32, i32
  }
  func.func @transform_1(%arg0: i32) -> (i32, i32) {
    %c0_i32 = arith.constant 0 : i32
    %c0_i32_0 = arith.constant 0 : i32
    %c0_i32_1 = arith.constant 0 : i32
    return %c0_i32, %c0_i32_0 : i32, i32
  }
  func.func @transform_2(%arg0: i32) -> (i32, i32) {
    %c0_i32 = arith.constant 0 : i32
    %c0_i32_0 = arith.constant 0 : i32
    %c0_i32_1 = arith.constant 0 : i32
    return %c0_i32, %c0_i32_0 : i32, i32
  }
  func.func @transform_3(%arg0: i32) -> (i32, i32) {
    %c0_i32 = arith.constant 0 : i32
    %c0_i32_0 = arith.constant 0 : i32
    %c0_i32_1 = arith.constant 0 : i32
    return %c0_i32, %c0_i32_0 : i32, i32
  }
  func.func @transform_4(%arg0: i32) -> (i32, i32) {
    %c0_i32 = arith.constant 0 : i32
    %c0_i32_0 = arith.constant 0 : i32
    return %c0_i32, %arg0 : i32, i32
  }
  func.func @transform_5(%arg0: i32) -> (i32, i32, i32) {
    %c0_i32 = arith.constant 0 : i32
    %c0_i32_0 = arith.constant 0 : i32
    %c0_i32_1 = arith.constant 0 : i32
    return %arg0, %c0_i32, %c0_i32_0 : i32, i32, i32
  }
  func.func @transform_6(%arg0: i32) -> (i32, i32, i32) {
    %c0_i32 = arith.constant 0 : i32
    %c0_i32_0 = arith.constant 0 : i32
    %c0_i32_1 = arith.constant 0 : i32
    return %arg0, %c0_i32, %c0_i32_0 : i32, i32, i32
  }
}

module attributes {stable_mosaic.version = 11 : i64} {
  func.func @kernel(%arg0: i32, %arg1: memref<8x32xf32, #tpu.memory_space<vmem>>, %arg2: memref<32x32xf32, #tpu.memory_space<vmem>>, %arg3: memref<32x32xf32, #tpu.memory_space<vmem>>, %arg4: memref<32x16xf32, #tpu.memory_space<vmem>>, %arg5: memref<1x8xi32, #tpu.memory_space<vmem>>, %arg6: memref<1x1x1xf32, #tpu.memory_space<vmem>>, %arg7: memref<1x1x1xf32, #tpu.memory_space<vmem>>) attributes {dimension_semantics = [#tpu.dimension_semantics<parallel>], iteration_bounds = array<i64: 1>, scalar_prefetch = 0 : i64, scratch_operands = 0 : i64, tpu.core_type = #tpu.core_type<tc>, window_params = [{transform_indices = @transform_0, window_bounds = array<i64: 8, 32>}, {pipeline_mode = #tpu.pipeline_mode<synchronous>, transform_indices = @transform_1, window_bounds = array<i64: 32, 32>}, {pipeline_mode = #tpu.pipeline_mode<synchronous>, transform_indices = @transform_2, window_bounds = array<i64: 32, 32>}, {pipeline_mode = #tpu.pipeline_mode<synchronous>, transform_indices = @transform_3, window_bounds = array<i64: 32, 16>}, {transform_indices = @transform_4, window_bounds = array<i64: 1, 8>}, {transform_indices = @transform_5, window_bounds = array<i64: 1, 1, 1>}, {transform_indices = @transform_6, window_bounds = array<i64: 1, 1, 1>}]} {
    %c0 = arith.constant 0 : index
    %c0_0 = arith.constant 0 : index
    %0 = vector.load %arg2[%c0, %c0_0] : memref<32x32xf32, #tpu.memory_space<vmem>>, vector<32x32xf32>
    %c0_1 = arith.constant 0 : index
    %c0_2 = arith.constant 0 : index
    %1 = vector.load %arg3[%c0_1, %c0_2] : memref<32x32xf32, #tpu.memory_space<vmem>>, vector<32x32xf32>
    %c0_3 = arith.constant 0 : index
    %c0_4 = arith.constant 0 : index
    %2 = vector.load %arg4[%c0_3, %c0_4] : memref<32x16xf32, #tpu.memory_space<vmem>>, vector<32x16xf32>
    %c0_5 = arith.constant 0 : index
    %c0_6 = arith.constant 0 : index
    %3 = vector.load %arg1[%c0_5, %c0_6] : memref<8x32xf32, #tpu.memory_space<vmem>>, vector<8x32xf32>
    %cst = arith.constant dense<0.000000e+00> : vector<8x32xf32>
    %4 = tpu.matmul %3, %0, %cst {dimension_numbers = #tpu.dot_dimension_numbers<[1], [0], [0], [1], [0, 0, 1, 1], [], []>} : vector<8x32xf32>, vector<32x32xf32>, vector<8x32xf32> -> vector<8x32xf32>
    %5 = arith.negf %4 : vector<8x32xf32>
    %6 = math.exp %5 : vector<8x32xf32>
    %cst_7 = arith.constant 1.000000e+00 : f32
    %7 = vector.broadcast %cst_7 : f32 to vector<8x32xf32>
    %8 = arith.addf %7, %6 : vector<8x32xf32>
    %9 = arith.divf %7, %8 : vector<8x32xf32>
    %cst_8 = arith.constant dense<0.000000e+00> : vector<8x32xf32>
    %10 = tpu.matmul %9, %1, %cst_8 {dimension_numbers = #tpu.dot_dimension_numbers<[1], [0], [0], [1], [0, 0, 1, 1], [], []>} : vector<8x32xf32>, vector<32x32xf32>, vector<8x32xf32> -> vector<8x32xf32>
    %11 = arith.negf %10 : vector<8x32xf32>
    %12 = math.exp %11 : vector<8x32xf32>
    %cst_9 = arith.constant 1.000000e+00 : f32
    %13 = vector.broadcast %cst_9 : f32 to vector<8x32xf32>
    %14 = arith.addf %13, %12 : vector<8x32xf32>
    %15 = arith.divf %13, %14 : vector<8x32xf32>
    %cst_10 = arith.constant dense<0.000000e+00> : vector<8x16xf32>
    %16 = tpu.matmul %15, %2, %cst_10 {dimension_numbers = #tpu.dot_dimension_numbers<[1], [0], [0], [1], [0, 0, 1, 1], [], []>} : vector<8x32xf32>, vector<32x16xf32>, vector<8x16xf32> -> vector<8x16xf32>
    %cst_11 = arith.constant dense<0xFF800000> : vector<8xf32>
    %17 = vector.multi_reduction <maximumf>, %16, %cst_11 [1] : vector<8x16xf32> to vector<8xf32>
    %18 = vector.shape_cast %17 : vector<8xf32> to vector<8x1xf32>
    %19 = vector.broadcast %18 : vector<8x1xf32> to vector<8x16xf32>
    %20 = arith.subf %16, %19 : vector<8x16xf32>
    %21 = math.exp %20 : vector<8x16xf32>
    %cst_12 = arith.constant dense<0.000000e+00> : vector<8xf32>
    %22 = vector.multi_reduction <add>, %21, %cst_12 [1] : vector<8x16xf32> to vector<8xf32>
    %23 = vector.shape_cast %22 : vector<8xf32> to vector<8x1xf32>
    %24 = math.log %23 : vector<8x1xf32>
    %25 = vector.shape_cast %24 : vector<8x1xf32> to vector<1x8x1xf32>
    %cst_13 = arith.constant dense<0.000000e+00> : vector<1xf32>
    %26 = vector.multi_reduction <add>, %25, %cst_13 [1, 2] : vector<1x8x1xf32> to vector<1xf32>
    %27 = vector.shape_cast %26 : vector<1xf32> to vector<1x1x1xf32>
    %28 = vector.extract %27[0, 0, 0] : f32 from vector<1x1x1xf32>
    %c0_14 = arith.constant 0 : index
    %c0_15 = arith.constant 0 : index
    %29 = vector.load %arg5[%c0_14, %c0_15] : memref<1x8xi32, #tpu.memory_space<vmem>>, vector<1x8xi32>
    %30 = tpu.iota {dimensions = array<i32: 0>} : vector<16x8xi32>
    %31 = vector.broadcast %29 : vector<1x8xi32> to vector<16x8xi32>
    %32 = arith.cmpi eq, %30, %31 : vector<16x8xi32>
    %33 = arith.extui %32 : vector<16x8xi1> to vector<16x8xi32>
    %34 = arith.sitofp %33 : vector<16x8xi32> to vector<16x8xf32>
    %cst_16 = arith.constant dense<0.000000e+00> : vector<16x16xf32>
    %35 = tpu.matmul %34, %20, %cst_16 {dimension_numbers = #tpu.dot_dimension_numbers<[1], [0], [0], [1], [0, 0, 1, 1], [], []>, precision = #tpu.contract_precision<fp32>} : vector<16x8xf32>, vector<8x16xf32>, vector<16x16xf32> -> vector<16x16xf32>
    %36 = tpu.iota {dimensions = array<i32: 0>} : vector<16x16xi32>
    %37 = tpu.iota {dimensions = array<i32: 1>} : vector<16x16xi32>
    %38 = arith.cmpi eq, %36, %37 : vector<16x16xi32>
    %cst_17 = arith.constant 0.000000e+00 : f32
    %39 = vector.broadcast %cst_17 : f32 to vector<16x16xf32>
    %40 = arith.select %38, %35, %39 : vector<16x16xi1>, vector<16x16xf32>
    %41 = vector.shape_cast %40 : vector<16x16xf32> to vector<1x16x16xf32>
    %cst_18 = arith.constant dense<0.000000e+00> : vector<1xf32>
    %42 = vector.multi_reduction <add>, %41, %cst_18 [1, 2] : vector<1x16x16xf32> to vector<1xf32>
    %43 = vector.shape_cast %42 : vector<1xf32> to vector<1x1x1xf32>
    %44 = vector.extract %43[0, 0, 0] : f32 from vector<1x1x1xf32>
    %45 = arith.subf %28, %44 : f32
    %46 = vector.broadcast %45 : f32 to vector<1x1x1xf32>
    %c0_19 = arith.constant 0 : index
    %c0_20 = arith.constant 0 : index
    %c0_21 = arith.constant 0 : index
    %47 = vector.load %arg6[%c0_19, %c0_20, %c0_21] : memref<1x1x1xf32, #tpu.memory_space<vmem>>, vector<1x1x1xf32>
    tpu.vector_store %arg6[%c0_19, %c0_20, %c0_21], %46 {strides = array<i32>} : memref<1x1x1xf32, #tpu.memory_space<vmem>>, vector<1x1x1xf32>,
    %cst_22 = arith.constant 0.000000e+00 : f32
    %48 = vector.broadcast %cst_22 : f32 to vector<1x1x1xf32>
    %c0_23 = arith.constant 0 : index
    %c0_24 = arith.constant 0 : index
    %c0_25 = arith.constant 0 : index
    %49 = vector.load %arg7[%c0_23, %c0_24, %c0_25] : memref<1x1x1xf32, #tpu.memory_space<vmem>>, vector<1x1x1xf32>
    tpu.vector_store %arg7[%c0_23, %c0_24, %c0_25], %48 {strides = array<i32>} : memref<1x1x1xf32, #tpu.memory_space<vmem>>, vector<1x1x1xf32>,
    %c0_i32 = arith.constant 0 : i32
    %50 = arith.cmpi eq, %arg0, %c0_i32 : i32
    %51 = arith.extui %50 : i1 to i32
    %c0_i32_26 = arith.constant 0 : i32
    %52 = arith.cmpi ne, %51, %c0_i32_26 : i32
    scf.if %52 {
      %53 = arith.mulf %0, %0 : vector<32x32xf32>
      %54 = vector.shape_cast %53 : vector<32x32xf32> to vector<1x32x32xf32>
      %cst_27 = arith.constant dense<0.000000e+00> : vector<1xf32>
      %55 = vector.multi_reduction <add>, %54, %cst_27 [1, 2] : vector<1x32x32xf32> to vector<1xf32>
      %56 = vector.shape_cast %55 : vector<1xf32> to vector<1x1x1xf32>
      %57 = vector.extract %56[0, 0, 0] : f32 from vector<1x1x1xf32>
      %58 = vector.broadcast %57 : f32 to vector<1x1x1xf32>
      %c0_28 = arith.constant 0 : index
      %c0_29 = arith.constant 0 : index
      %c0_30 = arith.constant 0 : index
      %59 = vector.load %arg7[%c0_28, %c0_29, %c0_30] : memref<1x1x1xf32, #tpu.memory_space<vmem>>, vector<1x1x1xf32>
      tpu.vector_store %arg7[%c0_28, %c0_29, %c0_30], %58 {strides = array<i32>} : memref<1x1x1xf32, #tpu.memory_space<vmem>>, vector<1x1x1xf32>,
    } else {
    }
    return
  }
  func.func @transform_0(%arg0: i32) -> (i32, i32) {
    %c0_i32 = arith.constant 0 : i32
    %c0_i32_0 = arith.constant 0 : i32
    return %arg0, %c0_i32 : i32, i32
  }
  func.func @transform_1(%arg0: i32) -> (i32, i32) {
    %c0_i32 = arith.constant 0 : i32
    %c0_i32_0 = arith.constant 0 : i32
    %c0_i32_1 = arith.constant 0 : i32
    return %c0_i32, %c0_i32_0 : i32, i32
  }
  func.func @transform_2(%arg0: i32) -> (i32, i32) {
    %c0_i32 = arith.constant 0 : i32
    %c0_i32_0 = arith.constant 0 : i32
    %c0_i32_1 = arith.constant 0 : i32
    return %c0_i32, %c0_i32_0 : i32, i32
  }
  func.func @transform_3(%arg0: i32) -> (i32, i32) {
    %c0_i32 = arith.constant 0 : i32
    %c0_i32_0 = arith.constant 0 : i32
    %c0_i32_1 = arith.constant 0 : i32
    return %c0_i32, %c0_i32_0 : i32, i32
  }
  func.func @transform_4(%arg0: i32) -> (i32, i32) {
    %c0_i32 = arith.constant 0 : i32
    %c0_i32_0 = arith.constant 0 : i32
    return %c0_i32, %arg0 : i32, i32
  }
  func.func @transform_5(%arg0: i32) -> (i32, i32, i32) {
    %c0_i32 = arith.constant 0 : i32
    %c0_i32_0 = arith.constant 0 : i32
    %c0_i32_1 = arith.constant 0 : i32
    return %arg0, %c0_i32, %c0_i32_0 : i32, i32, i32
  }
  func.func @transform_6(%arg0: i32) -> (i32, i32, i32) {
    %c0_i32 = arith.constant 0 : i32
    %c0_i32_0 = arith.constant 0 : i32
    %c0_i32_1 = arith.constant 0 : i32
    return %arg0, %c0_i32, %c0_i32_0 : i32, i32, i32
  }
}

</mosaic_0001>

<llo_original>
// kernel: tpu_custom_call.1
$region0: #{tpu_custom_call.1}
  #allocation0 [shape = 'u32[]', space=smem, size = 0x4, offset = 0x4, fixed_abs, tag = 'smem constant byte address 0x4 - core index']
  #allocation1 [shape = 'u32[144,128]{1,0:T(1,128)}', space=vmem, size = 0x12000, scoped, tag = 'internal scratch']
  %s0 = inlined_call_operand.vmem [shape: f32[8,32], index: 0, kind: input, shape index: {}]
  %s1 = inlined_call_operand.vmem [shape: f32[32,32], index: 1, kind: input, shape index: {}]
  %s2 = inlined_call_operand.hbm [shape: f32[32,32], index: 2, kind: input, shape index: {}]
  %s3 = inlined_call_operand.vmem [shape: f32[32,16], index: 3, kind: input, shape index: {}]
  %s4 = inlined_call_operand.vmem [shape: s32[1,8], index: 4, kind: input, shape index: {}]
  %s5 = inlined_call_operand.hbm [shape: f32[1,1,1], index: 5, kind: output, shape index: {0}]
  %s6 = inlined_call_operand.hbm [shape: f32[1,1,1], index: 6, kind: output, shape index: {1}]
  %7 = xla_tuple %s5, %s6
  %s8 = sld [smem:[#allocation0]]
  $region46: #{tpu_custom_call.1} parent=0
    _
  %s10 = ssub.s32 1, %s8
  %s11 = scalar_select 0, %s10, %s8
  $region1: #{tpu_custom_call.1} parent=0
    #allocation2 [shape = 'u8[16384]{0}', space=vmem, size = 0x4000, scoped, tag = 'input window, operand 2, single buffered']
    #allocation3 [shape = 's32[1]{0}', space=sflag, size = 0x4, scoped, tag = 'scoped memory for tpu_custom_call.1']
    #allocation4 [shape = 's32[1]{0}', space=sflag, size = 0x4, scoped, tag = 'scoped memory for tpu_custom_call.1']
    #allocation5 [shape = 'u8[512]{0}', space=vmem, size = 0x400, scoped, tag = 'output window, operand 0, single buffered']
    #allocation6 [shape = 'u8[512]{0}', space=vmem, size = 0x400, scoped, tag = 'output window, operand 1, single buffered']
    #allocation7 [shape = 's32[1]{0}', space=sflag, size = 0x4, scoped, tag = 'scoped memory for tpu_custom_call.1']
    %12 = vsyncpa [#allocation3], 0
    %13 = vsyncpa [#allocation4], 0
    %14 = vsyncpa [#allocation7], 0
    // Predicated region
    $region2: #{tpu_custom_call.1} parent=1 // pred_check
      _
    $region3: #{tpu_custom_call.1} parent=1 // pred_check_branch
      %16 = sbr.rel (0) target = $region5
    $region4: #{tpu_custom_call.1} parent=1 // pred_region
      _
    $region5: #{tpu_custom_call.1} parent=1 // pred_fallthru
      _
    // Predicated region
    $region6: #{tpu_custom_call.1} parent=1 // pred_check
      _
    $region7: #{tpu_custom_call.1} parent=1 // pred_check_branch
      %18 = sbr.rel (0) target = $region9
    $region8: #{tpu_custom_call.1} parent=1 // pred_region
      _
    $region9: #{tpu_custom_call.1} parent=1 // pred_fallthru
      _
    // Predicated region
    $region10: #{tpu_custom_call.1} parent=1 // pred_check
      _
    $region11: #{tpu_custom_call.1} parent=1 // pred_check_branch
      %20 = sbr.rel (0) target = $region13
    $region12: #{tpu_custom_call.1} parent=1 // pred_region
      %s22 = ssub.s32 512, 512
      %23 = vsyncadd [#allocation3], %s22
      %s24 = sshll.u32 [#allocation2], 4
      %s25 = int_to_ptr.vmem [resolvable:$true] %s24
      %30 = dma.hbm_to_vmem [thread:$0]  %s2, 512, %s25, [#allocation3], 128, 128, 8
    $region13: #{tpu_custom_call.1} parent=1 // pred_fallthru
      _
    // Predicated region
    $region14: #{tpu_custom_call.1} parent=1 // pred_check
      _
    $region15: #{tpu_custom_call.1} parent=1 // pred_check_branch
      %32 = sbr.rel (0) target = $region17
    $region16: #{tpu_custom_call.1} parent=1 // pred_region
      _
    $region17: #{tpu_custom_call.1} parent=1 // pred_fallthru
      _
    // Predicated region
    $region18: #{tpu_custom_call.1} parent=1 // pred_check
      _
    $region19: #{tpu_custom_call.1} parent=1 // pred_check_branch
      %34 = sbr.rel (0) target = $region21
    $region20: #{tpu_custom_call.1} parent=1 // pred_region
      _
    $region21: #{tpu_custom_call.1} parent=1 // pred_fallthru
      _
    // Predicated region
    $region22: #{tpu_custom_call.1} parent=1 // pred_check
      _
    $region23: #{tpu_custom_call.1} parent=1 // pred_check_branch
      %36 = sbr.rel (0) target = $region25
    $region24: #{tpu_custom_call.1} parent=1 // pred_region
      %37 = dma.done [#allocation3], 512
    $region25: #{tpu_custom_call.1} parent=1 // pred_fallthru
      _
    %v38 = vld [vmem:[%s1] sm:$0xff]
    %v39 = vld [vmem:[%s1 + $0x8] sm:$0xff]
    %v40 = vld [vmem:[%s1 + $0x10] sm:$0xff]
    %v41 = vld [vmem:[%s1 + $0x18] sm:$0xff]
    %v42 = vld [vmem:[#allocation2] sm:$0xff]
    %v43 = vld [vmem:[#allocation2 + $0x8] sm:$0xff]
    %v44 = vld [vmem:[#allocation2 + $0x10] sm:$0xff]
    %v45 = vld [vmem:[#allocation2 + $0x18] sm:$0xff]
    %v46 = vld [vmem:[%s3] sm:$0xff]
    %v47 = vld [vmem:[%s3 + $0x8] sm:$0xff]
    %v48 = vld [vmem:[%s3 + $0x10] sm:$0xff]
    %v49 = vld [vmem:[%s3 + $0x18] sm:$0xff]
    %v50 = vld [vmem:[%s0] sm:$0xff]
    %vm51 = vcmask 261120
    %v53 = vsel %vm51, %v50, 0
    %55 = vmatprep.subr.mxu0 0.0
    %56 = vmatpush1.msra.mxu0 %v38
    %57 = vmatprep.subr.mxu0 0.0
    %58 = vmatpush1.msra.mxu0 %v39
    %59 = vmatprep.subr.mxu0 0.0
    %60 = vmatpush1.msra.mxu0 %v40
    %61 = vmatprep.subr.mxu0 0.0
    %62 = vmatpush1.msra.mxu0 %v41
    %63 = vmatprep.subr.mxu0 0.0
    %64 = vmatpush1.msra.mxu0 0.0
    %65 = vmatprep.subr.mxu0 0.0
    %66 = vmatpush1.msra.mxu0 0.0
    %67 = vmatprep.subr.mxu0 0.0
    %68 = vmatpush1.msra.mxu0 0.0
    %69 = vmatprep.subr.mxu0 0.0
    %70 = vmatpush1.msra.mxu0 0.0
    %71 = vmatprep.subr.mxu0 0.0
    %72 = vmatpush1.msra.mxu0 0.0
    %73 = vmatprep.subr.mxu0 0.0
    %74 = vmatpush1.msra.mxu0 0.0
    %75 = vmatprep.subr.mxu0 0.0
    %76 = vmatpush1.msra.mxu0 0.0
    %77 = vmatprep.subr.mxu0 0.0
    %78 = vmatpush1.msra.mxu0 0.0
    %79 = vmatprep.subr.mxu0 0.0
    %80 = vmatpush1.msra.mxu0 0.0
    %81 = vmatprep.subr.mxu0 0.0
    %82 = vmatpush1.msra.mxu0 0.0
    %83 = vmatprep.subr.mxu0 0.0
    %84 = vmatpush1.msra.mxu0 0.0
    %85 = vmatprep.subr.mxu0 0.0
    %86 = vmatpush1.msra.mxu0 0.0
    %87 = vmatprep.subr.mxu0 0.0
    %88 = vmatpush1.msra.mxu0 0.0
    %89 = vmatprep.subr.mxu0 0.0
    %90 = vmatpush1.msra.mxu0 0.0
    %91 = vmatprep.subr.mxu0 0.0
    %92 = vmatpush1.msra.mxu0 0.0
    %93 = vmatprep.subr.mxu0 0.0
    %94 = vmatpush1.msra.mxu0 0.0
    %95 = vmatprep.subr.mxu0 0.0
    %96 = vmatpush1.msra.mxu0 0.0
    %97 = vmatprep.subr.mxu0 0.0
    %98 = vmatpush1.msra.mxu0 0.0
    %99 = vmatprep.subr.mxu0 0.0
    %100 = vmatpush1.msra.mxu0 0.0
    %101 = vmatprep.subr.mxu0 0.0
    %102 = vmatpush1.msra.mxu0 0.0
    %103 = vmatprep.subr.mxu0 0.0
    %104 = vmatpush1.msra.mxu0 0.0
    %105 = vmatprep.subr.mxu0 0.0
    %106 = vmatpush1.msra.mxu0 0.0
    %107 = vmatprep.subr.mxu0 0.0
    %108 = vmatpush1.msra.mxu0 0.0
    %109 = vmatprep.subr.mxu0 0.0
    %110 = vmatpush1.msra.mxu0 0.0
    %111 = vmatprep.subr.mxu0 0.0
    %112 = vmatpush1.msra.mxu0 0.0
    %113 = vmatprep.subr.mxu0 0.0
    %114 = vmatpush1.msra.mxu0 0.0
    %115 = vmatprep.subr.mxu0 0.0
    %116 = vmatpush1.msra.mxu0 0.0
    %117 = vmatprep.subr.mxu0 0.0
    %118 = vmatpush1.msra.mxu0 0.0
    %119 = vmatprep.mubr.f32.mxu0 0.0
    %120 = vmatmul.mubr.f32.gmra.mrb[0].mxu0 %v53
    %v121 = vpop.f32.mrb[0].mxu0
    %v122 = vadd.f32 0.0, %v121
    %v123 = vpop.f32.mrb[0].mxu0
    %124 = vdwg.mxu0
    %v125 = vxor.u32 %v122, 2147483648
    %v126 = vmul.f32 %v125, 1.442695
    %v127 = vpow.pop %v126
    %v128 = vadd.f32 %v127, 1.0
    %v129 = vrcp.pop %v128
    %v130 = vmul.f32 1.0, %v129
    %v132 = vsel %vm51, %v130, 0
    %134 = vmatprep.subr.mxu0 0.0
    %135 = vmatpush1.msra.mxu0 %v42
    %136 = vmatprep.subr.mxu0 0.0
    %137 = vmatpush1.msra.mxu0 %v43
    %138 = vmatprep.subr.mxu0 0.0
    %139 = vmatpush1.msra.mxu0 %v44
    %140 = vmatprep.subr.mxu0 0.0
    %141 = vmatpush1.msra.mxu0 %v45
    %142 = vmatprep.subr.mxu0 0.0
    %143 = vmatpush1.msra.mxu0 0.0
    %144 = vmatprep.subr.mxu0 0.0
    %145 = vmatpush1.msra.mxu0 0.0
    %146 = vmatprep.subr.mxu0 0.0
    %147 = vmatpush1.msra.mxu0 0.0
    %148 = vmatprep.subr.mxu0 0.0
    %149 = vmatpush1.msra.mxu0 0.0
    %150 = vmatprep.subr.mxu0 0.0
    %151 = vmatpush1.msra.mxu0 0.0
    %152 = vmatprep.subr.mxu0 0.0
    %153 = vmatpush1.msra.mxu0 0.0
    %154 = vmatprep.subr.mxu0 0.0
    %155 = vmatpush1.msra.mxu0 0.0
    %156 = vmatprep.subr.mxu0 0.0
    %157 = vmatpush1.msra.mxu0 0.0
    %158 = vmatprep.subr.mxu0 0.0
    %159 = vmatpush1.msra.mxu0 0.0
    %160 = vmatprep.subr.mxu0 0.0
    %161 = vmatpush1.msra.mxu0 0.0
    %162 = vmatprep.subr.mxu0 0.0
    %163 = vmatpush1.msra.mxu0 0.0
    %164 = vmatprep.subr.mxu0 0.0
    %165 = vmatpush1.msra.mxu0 0.0
    %166 = vmatprep.subr.mxu0 0.0
    %167 = vmatpush1.msra.mxu0 0.0
    %168 = vmatprep.subr.mxu0 0.0
    %169 = vmatpush1.msra.mxu0 0.0
    %170 = vmatprep.subr.mxu0 0.0
    %171 = vmatpush1.msra.mxu0 0.0
    %172 = vmatprep.subr.mxu0 0.0
    %173 = vmatpush1.msra.mxu0 0.0
    %174 = vmatprep.subr.mxu0 0.0
    %175 = vmatpush1.msra.mxu0 0.0
    %176 = vmatprep.subr.mxu0 0.0
    %177 = vmatpush1.msra.mxu0 0.0
    %178 = vmatprep.subr.mxu0 0.0
    %179 = vmatpush1.msra.mxu0 0.0
    %180 = vmatprep.subr.mxu0 0.0
    %181 = vmatpush1.msra.mxu0 0.0
    %182 = vmatprep.subr.mxu0 0.0
    %183 = vmatpush1.msra.mxu0 0.0
    %184 = vmatprep.subr.mxu0 0.0
    %185 = vmatpush1.msra.mxu0 0.0
    %186 = vmatprep.subr.mxu0 0.0
    %187 = vmatpush1.msra.mxu0 0.0
    %188 = vmatprep.subr.mxu0 0.0
    %189 = vmatpush1.msra.mxu0 0.0
    %190 = vmatprep.subr.mxu0 0.0
    %191 = vmatpush1.msra.mxu0 0.0
    %192 = vmatprep.subr.mxu0 0.0
    %193 = vmatpush1.msra.mxu0 0.0
    %194 = vmatprep.subr.mxu0 0.0
    %195 = vmatpush1.msra.mxu0 0.0
    %196 = vmatprep.subr.mxu0 0.0
    %197 = vmatpush1.msra.mxu0 0.0
    %198 = vmatprep.mubr.f32.mxu0 0.0
    %199 = vmatmul.mubr.f32.gmra.mrb[0].mxu0 %v132
    %v200 = vpop.f32.mrb[0].mxu0
    %v201 = vadd.f32 0.0, %v200
    %v202 = vpop.f32.mrb[0].mxu0
    %203 = vdwg.mxu0
    %v204 = vxor.u32 %v201, 2147483648
    %v205 = vmul.f32 %v204, 1.442695
    %v206 = vpow.pop %v205
    %v207 = vadd.f32 %v206, 1.0
    %v208 = vrcp.pop %v207
    %v209 = vmul.f32 1.0, %v208
    %v211 = vsel %vm51, %v209, 0
    %213 = vmatprep.subr.mxu0 0.0
    %214 = vmatpush1.msra.mxu0 %v46
    %215 = vmatprep.subr.mxu0 0.0
    %216 = vmatpush1.msra.mxu0 %v47
    %217 = vmatprep.subr.mxu0 0.0
    %218 = vmatpush1.msra.mxu0 %v48
    %219 = vmatprep.subr.mxu0 0.0
    %220 = vmatpush1.msra.mxu0 %v49
    %221 = vmatprep.subr.mxu0 0.0
    %222 = vmatpush1.msra.mxu0 0.0
    %223 = vmatprep.subr.mxu0 0.0
    %224 = vmatpush1.msra.mxu0 0.0
    %225 = vmatprep.subr.mxu0 0.0
    %226 = vmatpush1.msra.mxu0 0.0
    %227 = vmatprep.subr.mxu0 0.0
    %228 = vmatpush1.msra.mxu0 0.0
    %229 = vmatprep.subr.mxu0 0.0
    %230 = vmatpush1.msra.mxu0 0.0
    %231 = vmatprep.subr.mxu0 0.0
    %232 = vmatpush1.msra.mxu0 0.0
    %233 = vmatprep.subr.mxu0 0.0
    %234 = vmatpush1.msra.mxu0 0.0
    %235 = vmatprep.subr.mxu0 0.0
    %236 = vmatpush1.msra.mxu0 0.0
    %237 = vmatprep.subr.mxu0 0.0
    %238 = vmatpush1.msra.mxu0 0.0
    %239 = vmatprep.subr.mxu0 0.0
    %240 = vmatpush1.msra.mxu0 0.0
    %241 = vmatprep.subr.mxu0 0.0
    %242 = vmatpush1.msra.mxu0 0.0
    %243 = vmatprep.subr.mxu0 0.0
    %244 = vmatpush1.msra.mxu0 0.0
    %245 = vmatprep.subr.mxu0 0.0
    %246 = vmatpush1.msra.mxu0 0.0
    %247 = vmatprep.subr.mxu0 0.0
    %248 = vmatpush1.msra.mxu0 0.0
    %249 = vmatprep.subr.mxu0 0.0
    %250 = vmatpush1.msra.mxu0 0.0
    %251 = vmatprep.subr.mxu0 0.0
    %252 = vmatpush1.msra.mxu0 0.0
    %253 = vmatprep.subr.mxu0 0.0
    %254 = vmatpush1.msra.mxu0 0.0
    %255 = vmatprep.subr.mxu0 0.0
    %256 = vmatpush1.msra.mxu0 0.0
    %257 = vmatprep.subr.mxu0 0.0
    %258 = vmatpush1.msra.mxu0 0.0
    %259 = vmatprep.subr.mxu0 0.0
    %260 = vmatpush1.msra.mxu0 0.0
    %261 = vmatprep.subr.mxu0 0.0
    %262 = vmatpush1.msra.mxu0 0.0
    %263 = vmatprep.subr.mxu0 0.0
    %264 = vmatpush1.msra.mxu0 0.0
    %265 = vmatprep.subr.mxu0 0.0
    %266 = vmatpush1.msra.mxu0 0.0
    %267 = vmatprep.subr.mxu0 0.0
    %268 = vmatpush1.msra.mxu0 0.0
    %269 = vmatprep.subr.mxu0 0.0
    %270 = vmatpush1.msra.mxu0 0.0
    %271 = vmatprep.subr.mxu0 0.0
    %272 = vmatpush1.msra.mxu0 0.0
    %273 = vmatprep.subr.mxu0 0.0
    %274 = vmatpush1.msra.mxu0 0.0
    %275 = vmatprep.subr.mxu0 0.0
    %276 = vmatpush1.msra.mxu0 0.0
    %277 = vmatprep.mubr.f32.mxu0 0.0
    %278 = vmatmul.mubr.f32.gmra.mrb[0].mxu0 %v211
    %v279 = vpop.f32.mrb[0].mxu0
    %v280 = vadd.f32 0.0, %v279
    %v281 = vpop.f32.mrb[0].mxu0
    %282 = vdwg.mxu0
    %vm283 = vcmask 130048
    %v284 = vsel %vm283, %v280, -inf
    %285 = vmax.xlane.f32.xlu0 %v284
    %v286 = vpop.xlane.xlu0 %285
    %v287 = vsub.f32 %v280, %v286
    %v288 = vmul.f32 %v287, 1.442695
    %v289 = vpow.pop %v288
    %v290 = vsel %vm283, %v289, 0.0
    %291 = vadd.xlane.f32.xlu0 %v290
    %v292 = vpop.xlane.xlu0 %291
    %v293 = vlog2.pop %v292
    %v294 = vmul.f32 %v293, 0.6931472
    %vm295 = vcmask 7168
    %v296 = vsel %vm295, %v294, 0.0
    %297 = vadd.xlane.f32.xlu0 %v296
    %v298 = vpop.xlane.xlu0 %297
    %v299 = vrot.slane %v298, 4
    %v300 = vadd.f32 %v298, %v299
    %v301 = vrot.slane %v300, 2
    %v302 = vadd.f32 %v300, %v301
    %v303 = vrot.slane %v302, 1
    %v304 = vadd.f32 %v302, %v303
    %s305 = vtos %v304
    %v306 = vld [vmem:[%s4] sm:$0x1]
    %v307 = vlaneseq
    %v308 = vshrl.u32 %v307, 7
    %v309 = vadd.s32 %v308, 8
    %v310 = vlaneseq
    %v311 = vshrl.u32 %v310, 7
    %v312 = vsub.s32 0, %v311
    %v313 = vrot.slane %v306, %v312
    %vm314 = vcmp.eq.s32.totalorder %v308, %v313
    %vm315 = vcmp.eq.s32.totalorder %v309, %v313
    %v316 = vsel %vm314, 1, 0
    %v317 = vsel %vm315, 1, 0
    %v318 = vcvt.s32.f32 %v316
    %v319 = vcvt.s32.f32 %v317
    %vm320 = vcmask 64512
    %v322 = vsel %vm320, %v318, 0
    %v325 = vsel %vm320, %v319, 0
    %327 = vmatprep.subr.mxu0 0.0
    %v328 = vand.u32 %v287, 4294901760
    %329 = vmatpush1.msra.mxu0 %v328
    %330 = vmatprep.subr.mxu0 0.0
    %331 = vmatpush1.msra.mxu0 0.0
    %332 = vmatprep.subr.mxu0 0.0
    %333 = vmatpush1.msra.mxu0 0.0
    %334 = vmatprep.subr.mxu0 0.0
    %335 = vmatpush1.msra.mxu0 0.0
    %336 = vmatprep.subr.mxu0 0.0
    %337 = vmatpush1.msra.mxu0 0.0
    %338 = vmatprep.subr.mxu0 0.0
    %339 = vmatpush1.msra.mxu0 0.0
    %340 = vmatprep.subr.mxu0 0.0
    %341 = vmatpush1.msra.mxu0 0.0
    %342 = vmatprep.subr.mxu0 0.0
    %343 = vmatpush1.msra.mxu0 0.0
    %344 = vmatprep.subr.mxu0 0.0
    %345 = vmatpush1.msra.mxu0 0.0
    %346 = vmatprep.subr.mxu0 0.0
    %347 = vmatpush1.msra.mxu0 0.0
    %348 = vmatprep.subr.mxu0 0.0
    %349 = vmatpush1.msra.mxu0 0.0
    %350 = vmatprep.subr.mxu0 0.0
    %351 = vmatpush1.msra.mxu0 0.0
    %352 = vmatprep.subr.mxu0 0.0
    %353 = vmatpush1.msra.mxu0 0.0
    %354 = vmatprep.subr.mxu0 0.0
    %355 = vmatpush1.msra.mxu0 0.0
    %356 = vmatprep.subr.mxu0 0.0
    %357 = vmatpush1.msra.mxu0 0.0
    %358 = vmatprep.subr.mxu0 0.0
    %359 = vmatpush1.msra.mxu0 0.0
    %360 = vmatprep.subr.mxu0 0.0
    %361 = vmatpush1.msra.mxu0 0.0
    %362 = vmatprep.subr.mxu0 0.0
    %363 = vmatpush1.msra.mxu0 0.0
    %364 = vmatprep.subr.mxu0 0.0
    %365 = vmatpush1.msra.mxu0 0.0
    %366 = vmatprep.subr.mxu0 0.0
    %367 = vmatpush1.msra.mxu0 0.0
    %368 = vmatprep.subr.mxu0 0.0
    %369 = vmatpush1.msra.mxu0 0.0
    %370 = vmatprep.subr.mxu0 0.0
    %371 = vmatpush1.msra.mxu0 0.0
    %372 = vmatprep.subr.mxu0 0.0
    %373 = vmatpush1.msra.mxu0 0.0
    %374 = vmatprep.subr.mxu0 0.0
    %375 = vmatpush1.msra.mxu0 0.0
    %376 = vmatprep.subr.mxu0 0.0
    %377 = vmatpush1.msra.mxu0 0.0
    %378 = vmatprep.subr.mxu0 0.0
    %379 = vmatpush1.msra.mxu0 0.0
    %380 = vmatprep.subr.mxu0 0.0
    %381 = vmatpush1.msra.mxu0 0.0
    %382 = vmatprep.subr.mxu0 0.0
    %383 = vmatpush1.msra.mxu0 0.0
    %384 = vmatprep.subr.mxu0 0.0
    %385 = vmatpush1.msra.mxu0 0.0
    %386 = vmatprep.subr.mxu0 0.0
    %387 = vmatpush1.msra.mxu0 0.0
    %388 = vmatprep.subr.mxu0 0.0
    %389 = vmatpush1.msra.mxu0 0.0
    %390 = vmatprep.subr.mxu0 0.0
    %391 = vmatpush1.msra.mxu0 0.0
    %392 = vmatprep.mubr.f32.mxu0 0.0
    %v393 = vand.u32 %v322, 4294901760
    %v394 = vsub.f32 %v322, %v393
    %v395 = vand.u32 %v394, 4294901760
    %v396 = vsub.f32 %v394, %v395
    %v397 = vand.u32 %v396, 4294901760
    %398 = vmatmul.mubr.f32.gmra.mrb[0].mxu0 %v397
    %v399 = vpop.f32.mrb[0].mxu0
    %v400 = vadd.f32 0.0, %v399
    %v401 = vpop.f32.mrb[0].mxu0
    %402 = vmatprep.mubr.f32.mxu0 0.0
    %v403 = vand.u32 %v325, 4294901760
    %v404 = vsub.f32 %v325, %v403
    %v405 = vand.u32 %v404, 4294901760
    %v406 = vsub.f32 %v404, %v405
    %v407 = vand.u32 %v406, 4294901760
    %408 = vmatmul.mubr.f32.gmra.mrb[0].mxu0 %v407
    %v409 = vpop.f32.mrb[0].mxu0
    %v410 = vadd.f32 0.0, %v409
    %v411 = vpop.f32.mrb[0].mxu0
    %412 = vdwg.mxu0
    %413 = vmatprep.subr.mxu0 0.0
    %v414 = vand.u32 %v287, 4294901760
    %v415 = vsub.f32 %v287, %v414
    %v416 = vand.u32 %v415, 4294901760
    %v417 = vsub.f32 %v415, %v416
    %v418 = vand.u32 %v417, 4294901760
    %419 = vmatpush1.msra.mxu0 %v418
    %420 = vmatprep.subr.mxu0 0.0
    %421 = vmatpush1.msra.mxu0 0.0
    %422 = vmatprep.subr.mxu0 0.0
    %423 = vmatpush1.msra.mxu0 0.0
    %424 = vmatprep.subr.mxu0 0.0
    %425 = vmatpush1.msra.mxu0 0.0
    %426 = vmatprep.subr.mxu0 0.0
    %427 = vmatpush1.msra.mxu0 0.0
    %428 = vmatprep.subr.mxu0 0.0
    %429 = vmatpush1.msra.mxu0 0.0
    %430 = vmatprep.subr.mxu0 0.0
    %431 = vmatpush1.msra.mxu0 0.0
    %432 = vmatprep.subr.mxu0 0.0
    %433 = vmatpush1.msra.mxu0 0.0
    %434 = vmatprep.subr.mxu0 0.0
    %435 = vmatpush1.msra.mxu0 0.0
    %436 = vmatprep.subr.mxu0 0.0
    %437 = vmatpush1.msra.mxu0 0.0
    %438 = vmatprep.subr.mxu0 0.0
    %439 = vmatpush1.msra.mxu0 0.0
    %440 = vmatprep.subr.mxu0 0.0
    %441 = vmatpush1.msra.mxu0 0.0
    %442 = vmatprep.subr.mxu0 0.0
    %443 = vmatpush1.msra.mxu0 0.0
    %444 = vmatprep.subr.mxu0 0.0
    %445 = vmatpush1.msra.mxu0 0.0
    %446 = vmatprep.subr.mxu0 0.0
    %447 = vmatpush1.msra.mxu0 0.0
    %448 = vmatprep.subr.mxu0 0.0
    %449 = vmatpush1.msra.mxu0 0.0
    %450 = vmatprep.subr.mxu0 0.0
    %451 = vmatpush1.msra.mxu0 0.0
    %452 = vmatprep.subr.mxu0 0.0
    %453 = vmatpush1.msra.mxu0 0.0
    %454 = vmatprep.subr.mxu0 0.0
    %455 = vmatpush1.msra.mxu0 0.0
    %456 = vmatprep.subr.mxu0 0.0
    %457 = vmatpush1.msra.mxu0 0.0
    %458 = vmatprep.subr.mxu0 0.0
    %459 = vmatpush1.msra.mxu0 0.0
    %460 = vmatprep.subr.mxu0 0.0
    %461 = vmatpush1.msra.mxu0 0.0
    %462 = vmatprep.subr.mxu0 0.0
    %463 = vmatpush1.msra.mxu0 0.0
    %464 = vmatprep.subr.mxu0 0.0
    %465 = vmatpush1.msra.mxu0 0.0
    %466 = vmatprep.subr.mxu0 0.0
    %467 = vmatpush1.msra.mxu0 0.0
    %468 = vmatprep.subr.mxu0 0.0
    %469 = vmatpush1.msra.mxu0 0.0
    %470 = vmatprep.subr.mxu0 0.0
    %471 = vmatpush1.msra.mxu0 0.0
    %472 = vmatprep.subr.mxu0 0.0
    %473 = vmatpush1.msra.mxu0 0.0
    %474 = vmatprep.subr.mxu0 0.0
    %475 = vmatpush1.msra.mxu0 0.0
    %476 = vmatprep.subr.mxu0 0.0
    %477 = vmatpush1.msra.mxu0 0.0
    %478 = vmatprep.subr.mxu0 0.0
    %479 = vmatpush1.msra.mxu0 0.0
    %480 = vmatprep.subr.mxu0 0.0
    %481 = vmatpush1.msra.mxu0 0.0
    %482 = vmatprep.mubr.f32.mxu0 0.0
    %v483 = vand.u32 %v322, 4294901760
    %484 = vmatmul.mubr.f32.gmra.mrb[0].mxu0 %v483
    %v485 = vpop.f32.mrb[0].mxu0
    %v486 = vadd.f32 %v400, %v485
    %v487 = vpop.f32.mrb[0].mxu0
    %488 = vmatprep.mubr.f32.mxu0 0.0
    %v489 = vand.u32 %v325, 4294901760
    %490 = vmatmul.mubr.f32.gmra.mrb[0].mxu0 %v489
    %v491 = vpop.f32.mrb[0].mxu0
    %v492 = vadd.f32 %v410, %v491
    %v493 = vpop.f32.mrb[0].mxu0
    %494 = vdwg.mxu0
    %495 = vmatprep.subr.mxu0 0.0
    %v496 = vand.u32 %v287, 4294901760
    %v497 = vsub.f32 %v287, %v496
    %498 = vmatpush1.msra.mxu0 %v497
    %499 = vmatprep.subr.mxu0 0.0
    %500 = vmatpush1.msra.mxu0 0.0
    %501 = vmatprep.subr.mxu0 0.0
    %502 = vmatpush1.msra.mxu0 0.0
    %503 = vmatprep.subr.mxu0 0.0
    %504 = vmatpush1.msra.mxu0 0.0
    %505 = vmatprep.subr.mxu0 0.0
    %506 = vmatpush1.msra.mxu0 0.0
    %507 = vmatprep.subr.mxu0 0.0
    %508 = vmatpush1.msra.mxu0 0.0
    %509 = vmatprep.subr.mxu0 0.0
    %510 = vmatpush1.msra.mxu0 0.0
    %511 = vmatprep.subr.mxu0 0.0
    %512 = vmatpush1.msra.mxu0 0.0
    %513 = vmatprep.subr.mxu0 0.0
    %514 = vmatpush1.msra.mxu0 0.0
    %515 = vmatprep.subr.mxu0 0.0
    %516 = vmatpush1.msra.mxu0 0.0
    %517 = vmatprep.subr.mxu0 0.0
    %518 = vmatpush1.msra.mxu0 0.0
    %519 = vmatprep.subr.mxu0 0.0
    %520 = vmatpush1.msra.mxu0 0.0
    %521 = vmatprep.subr.mxu0 0.0
    %522 = vmatpush1.msra.mxu0 0.0
    %523 = vmatprep.subr.mxu0 0.0
    %524 = vmatpush1.msra.mxu0 0.0
    %525 = vmatprep.subr.mxu0 0.0
    %526 = vmatpush1.msra.mxu0 0.0
    %527 = vmatprep.subr.mxu0 0.0
    %528 = vmatpush1.msra.mxu0 0.0
    %529 = vmatprep.subr.mxu0 0.0
    %530 = vmatpush1.msra.mxu0 0.0
    %531 = vmatprep.subr.mxu0 0.0
    %532 = vmatpush1.msra.mxu0 0.0
    %533 = vmatprep.subr.mxu0 0.0
    %534 = vmatpush1.msra.mxu0 0.0
    %535 = vmatprep.subr.mxu0 0.0
    %536 = vmatpush1.msra.mxu0 0.0
    %537 = vmatprep.subr.mxu0 0.0
    %538 = vmatpush1.msra.mxu0 0.0
    %539 = vmatprep.subr.mxu0 0.0
    %540 = vmatpush1.msra.mxu0 0.0
    %541 = vmatprep.subr.mxu0 0.0
    %542 = vmatpush1.msra.mxu0 0.0
    %543 = vmatprep.subr.mxu0 0.0
    %544 = vmatpush1.msra.mxu0 0.0
    %545 = vmatprep.subr.mxu0 0.0
    %546 = vmatpush1.msra.mxu0 0.0
    %547 = vmatprep.subr.mxu0 0.0
    %548 = vmatpush1.msra.mxu0 0.0
    %549 = vmatprep.subr.mxu0 0.0
    %550 = vmatpush1.msra.mxu0 0.0
    %551 = vmatprep.subr.mxu0 0.0
    %552 = vmatpush1.msra.mxu0 0.0
    %553 = vmatprep.subr.mxu0 0.0
    %554 = vmatpush1.msra.mxu0 0.0
    %555 = vmatprep.subr.mxu0 0.0
    %556 = vmatpush1.msra.mxu0 0.0
    %557 = vmatprep.subr.mxu0 0.0
    %558 = vmatpush1.msra.mxu0 0.0
    %559 = vmatprep.subr.mxu0 0.0
    %560 = vmatpush1.msra.mxu0 0.0
    %561 = vmatprep.mubr.f32.mxu0 0.0
    %v562 = vand.u32 %v322, 4294901760
    %v563 = vsub.f32 %v322, %v562
    %564 = vmatmul.mubr.f32.gmra.mrb[0].mxu0 %v563
    %v565 = vpop.f32.mrb[0].mxu0
    %v566 = vadd.f32 %v486, %v565
    %v567 = vpop.f32.mrb[0].mxu0
    %568 = vmatprep.mubr.f32.mxu0 0.0
    %v569 = vand.u32 %v325, 4294901760
    %v570 = vsub.f32 %v325, %v569
    %571 = vmatmul.mubr.f32.gmra.mrb[0].mxu0 %v570
    %v572 = vpop.f32.mrb[0].mxu0
    %v573 = vadd.f32 %v492, %v572
    %v574 = vpop.f32.mrb[0].mxu0
    %575 = vdwg.mxu0
    %576 = vmatprep.subr.mxu0 0.0
    %v577 = vand.u32 %v287, 4294901760
    %578 = vmatpush1.msra.mxu0 %v577
    %579 = vmatprep.subr.mxu0 0.0
    %580 = vmatpush1.msra.mxu0 0.0
    %581 = vmatprep.subr.mxu0 0.0
    %582 = vmatpush1.msra.mxu0 0.0
    %583 = vmatprep.subr.mxu0 0.0
    %584 = vmatpush1.msra.mxu0 0.0
    %585 = vmatprep.subr.mxu0 0.0
    %586 = vmatpush1.msra.mxu0 0.0
    %587 = vmatprep.subr.mxu0 0.0
    %588 = vmatpush1.msra.mxu0 0.0
    %589 = vmatprep.subr.mxu0 0.0
    %590 = vmatpush1.msra.mxu0 0.0
    %591 = vmatprep.subr.mxu0 0.0
    %592 = vmatpush1.msra.mxu0 0.0
    %593 = vmatprep.subr.mxu0 0.0
    %594 = vmatpush1.msra.mxu0 0.0
    %595 = vmatprep.subr.mxu0 0.0
    %596 = vmatpush1.msra.mxu0 0.0
    %597 = vmatprep.subr.mxu0 0.0
    %598 = vmatpush1.msra.mxu0 0.0
    %599 = vmatprep.subr.mxu0 0.0
    %600 = vmatpush1.msra.mxu0 0.0
    %601 = vmatprep.subr.mxu0 0.0
    %602 = vmatpush1.msra.mxu0 0.0
    %603 = vmatprep.subr.mxu0 0.0
    %604 = vmatpush1.msra.mxu0 0.0
    %605 = vmatprep.subr.mxu0 0.0
    %606 = vmatpush1.msra.mxu0 0.0
    %607 = vmatprep.subr.mxu0 0.0
    %608 = vmatpush1.msra.mxu0 0.0
    %609 = vmatprep.subr.mxu0 0.0
    %610 = vmatpush1.msra.mxu0 0.0
    %611 = vmatprep.subr.mxu0 0.0
    %612 = vmatpush1.msra.mxu0 0.0
    %613 = vmatprep.subr.mxu0 0.0
    %614 = vmatpush1.msra.mxu0 0.0
    %615 = vmatprep.subr.mxu0 0.0
    %616 = vmatpush1.msra.mxu0 0.0
    %617 = vmatprep.subr.mxu0 0.0
    %618 = vmatpush1.msra.mxu0 0.0
    %619 = vmatprep.subr.mxu0 0.0
    %620 = vmatpush1.msra.mxu0 0.0
    %621 = vmatprep.subr.mxu0 0.0
    %622 = vmatpush1.msra.mxu0 0.0
    %623 = vmatprep.subr.mxu0 0.0
    %624 = vmatpush1.msra.mxu0 0.0
    %625 = vmatprep.subr.mxu0 0.0
    %626 = vmatpush1.msra.mxu0 0.0
    %627 = vmatprep.subr.mxu0 0.0
    %628 = vmatpush1.msra.mxu0 0.0
    %629 = vmatprep.subr.mxu0 0.0
    %630 = vmatpush1.msra.mxu0 0.0
    %631 = vmatprep.subr.mxu0 0.0
    %632 = vmatpush1.msra.mxu0 0.0
    %633 = vmatprep.subr.mxu0 0.0
    %634 = vmatpush1.msra.mxu0 0.0
    %635 = vmatprep.subr.mxu0 0.0
    %636 = vmatpush1.msra.mxu0 0.0
    %637 = vmatprep.subr.mxu0 0.0
    %638 = vmatpush1.msra.mxu0 0.0
    %639 = vmatprep.subr.mxu0 0.0
    %640 = vmatpush1.msra.mxu0 0.0
    %641 = vmatprep.mubr.f32.mxu0 0.0
    %v642 = vand.u32 %v322, 4294901760
    %v643 = vsub.f32 %v322, %v642
    %v644 = vand.u32 %v643, 4294901760
    %645 = vmatmul.mubr.f32.gmra.mrb[0].mxu0 %v644
    %v646 = vpop.f32.mrb[0].mxu0
    %v647 = vadd.f32 %v566, %v646
    %v648 = vpop.f32.mrb[0].mxu0
    %649 = vmatprep.mubr.f32.mxu0 0.0
    %v650 = vand.u32 %v325, 4294901760
    %v651 = vsub.f32 %v325, %v650
    %v652 = vand.u32 %v651, 4294901760
    %653 = vmatmul.mubr.f32.gmra.mrb[0].mxu0 %v652
    %v654 = vpop.f32.mrb[0].mxu0
    %v655 = vadd.f32 %v573, %v654
    %v656 = vpop.f32.mrb[0].mxu0
    %657 = vdwg.mxu0
    %658 = vmatprep.subr.mxu0 0.0
    %v659 = vand.u32 %v287, 4294901760
    %v660 = vsub.f32 %v287, %v659
    %v661 = vand.u32 %v660, 4294901760
    %662 = vmatpush1.msra.mxu0 %v661
    %663 = vmatprep.subr.mxu0 0.0
    %664 = vmatpush1.msra.mxu0 0.0
    %665 = vmatprep.subr.mxu0 0.0
    %666 = vmatpush1.msra.mxu0 0.0
    %667 = vmatprep.subr.mxu0 0.0
    %668 = vmatpush1.msra.mxu0 0.0
    %669 = vmatprep.subr.mxu0 0.0
    %670 = vmatpush1.msra.mxu0 0.0
    %671 = vmatprep.subr.mxu0 0.0
    %672 = vmatpush1.msra.mxu0 0.0
    %673 = vmatprep.subr.mxu0 0.0
    %674 = vmatpush1.msra.mxu0 0.0
    %675 = vmatprep.subr.mxu0 0.0
    %676 = vmatpush1.msra.mxu0 0.0
    %677 = vmatprep.subr.mxu0 0.0
    %678 = vmatpush1.msra.mxu0 0.0
    %679 = vmatprep.subr.mxu0 0.0
    %680 = vmatpush1.msra.mxu0 0.0
    %681 = vmatprep.subr.mxu0 0.0
    %682 = vmatpush1.msra.mxu0 0.0
    %683 = vmatprep.subr.mxu0 0.0
    %684 = vmatpush1.msra.mxu0 0.0
    %685 = vmatprep.subr.mxu0 0.0
    %686 = vmatpush1.msra.mxu0 0.0
    %687 = vmatprep.subr.mxu0 0.0
    %688 = vmatpush1.msra.mxu0 0.0
    %689 = vmatprep.subr.mxu0 0.0
    %690 = vmatpush1.msra.mxu0 0.0
    %691 = vmatprep.subr.mxu0 0.0
    %692 = vmatpush1.msra.mxu0 0.0
    %693 = vmatprep.subr.mxu0 0.0
    %694 = vmatpush1.msra.mxu0 0.0
    %695 = vmatprep.subr.mxu0 0.0
    %696 = vmatpush1.msra.mxu0 0.0
    %697 = vmatprep.subr.mxu0 0.0
    %698 = vmatpush1.msra.mxu0 0.0
    %699 = vmatprep.subr.mxu0 0.0
    %700 = vmatpush1.msra.mxu0 0.0
    %701 = vmatprep.subr.mxu0 0.0
    %702 = vmatpush1.msra.mxu0 0.0
    %703 = vmatprep.subr.mxu0 0.0
    %704 = vmatpush1.msra.mxu0 0.0
    %705 = vmatprep.subr.mxu0 0.0
    %706 = vmatpush1.msra.mxu0 0.0
    %707 = vmatprep.subr.mxu0 0.0
    %708 = vmatpush1.msra.mxu0 0.0
    %709 = vmatprep.subr.mxu0 0.0
    %710 = vmatpush1.msra.mxu0 0.0
    %711 = vmatprep.subr.mxu0 0.0
    %712 = vmatpush1.msra.mxu0 0.0
    %713 = vmatprep.subr.mxu0 0.0
    %714 = vmatpush1.msra.mxu0 0.0
    %715 = vmatprep.subr.mxu0 0.0
    %716 = vmatpush1.msra.mxu0 0.0
    %717 = vmatprep.subr.mxu0 0.0
    %718 = vmatpush1.msra.mxu0 0.0
    %719 = vmatprep.subr.mxu0 0.0
    %720 = vmatpush1.msra.mxu0 0.0
    %721 = vmatprep.subr.mxu0 0.0
    %722 = vmatpush1.msra.mxu0 0.0
    %723 = vmatprep.subr.mxu0 0.0
    %724 = vmatpush1.msra.mxu0 0.0
    %725 = vmatprep.mubr.f32.mxu0 0.0
    %v726 = vand.u32 %v322, 4294901760
    %727 = vmatmul.mubr.f32.gmra.mrb[0].mxu0 %v726
    %v728 = vpop.f32.mrb[0].mxu0
    %v729 = vadd.f32 %v647, %v728
    %v730 = vpop.f32.mrb[0].mxu0
    %731 = vmatprep.mubr.f32.mxu0 0.0
    %v732 = vand.u32 %v325, 4294901760
    %733 = vmatmul.mubr.f32.gmra.mrb[0].mxu0 %v732
    %v734 = vpop.f32.mrb[0].mxu0
    %v735 = vadd.f32 %v655, %v734
    %v736 = vpop.f32.mrb[0].mxu0
    %737 = vdwg.mxu0
    %738 = vmatprep.subr.mxu0 0.0
    %v739 = vand.u32 %v287, 4294901760
    %740 = vmatpush1.msra.mxu0 %v739
    %741 = vmatprep.subr.mxu0 0.0
    %742 = vmatpush1.msra.mxu0 0.0
    %743 = vmatprep.subr.mxu0 0.0
    %744 = vmatpush1.msra.mxu0 0.0
    %745 = vmatprep.subr.mxu0 0.0
    %746 = vmatpush1.msra.mxu0 0.0
    %747 = vmatprep.subr.mxu0 0.0
    %748 = vmatpush1.msra.mxu0 0.0
    %749 = vmatprep.subr.mxu0 0.0
    %750 = vmatpush1.msra.mxu0 0.0
    %751 = vmatprep.subr.mxu0 0.0
    %752 = vmatpush1.msra.mxu0 0.0
    %753 = vmatprep.subr.mxu0 0.0
    %754 = vmatpush1.msra.mxu0 0.0
    %755 = vmatprep.subr.mxu0 0.0
    %756 = vmatpush1.msra.mxu0 0.0
    %757 = vmatprep.subr.mxu0 0.0
    %758 = vmatpush1.msra.mxu0 0.0
    %759 = vmatprep.subr.mxu0 0.0
    %760 = vmatpush1.msra.mxu0 0.0
    %761 = vmatprep.subr.mxu0 0.0
    %762 = vmatpush1.msra.mxu0 0.0
    %763 = vmatprep.subr.mxu0 0.0
    %764 = vmatpush1.msra.mxu0 0.0
    %765 = vmatprep.subr.mxu0 0.0
    %766 = vmatpush1.msra.mxu0 0.0
    %767 = vmatprep.subr.mxu0 0.0
    %768 = vmatpush1.msra.mxu0 0.0
    %769 = vmatprep.subr.mxu0 0.0
    %770 = vmatpush1.msra.mxu0 0.0
    %771 = vmatprep.subr.mxu0 0.0
    %772 = vmatpush1.msra.mxu0 0.0
    %773 = vmatprep.subr.mxu0 0.0
    %774 = vmatpush1.msra.mxu0 0.0
    %775 = vmatprep.subr.mxu0 0.0
    %776 = vmatpush1.msra.mxu0 0.0
    %777 = vmatprep.subr.mxu0 0.0
    %778 = vmatpush1.msra.mxu0 0.0
    %779 = vmatprep.subr.mxu0 0.0
    %780 = vmatpush1.msra.mxu0 0.0
    %781 = vmatprep.subr.mxu0 0.0
    %782 = vmatpush1.msra.mxu0 0.0
    %783 = vmatprep.subr.mxu0 0.0
    %784 = vmatpush1.msra.mxu0 0.0
    %785 = vmatprep.subr.mxu0 0.0
    %786 = vmatpush1.msra.mxu0 0.0
    %787 = vmatprep.subr.mxu0 0.0
    %788 = vmatpush1.msra.mxu0 0.0
    %789 = vmatprep.subr.mxu0 0.0
    %790 = vmatpush1.msra.mxu0 0.0
    %791 = vmatprep.subr.mxu0 0.0
    %792 = vmatpush1.msra.mxu0 0.0
    %793 = vmatprep.subr.mxu0 0.0
    %794 = vmatpush1.msra.mxu0 0.0
    %795 = vmatprep.subr.mxu0 0.0
    %796 = vmatpush1.msra.mxu0 0.0
    %797 = vmatprep.subr.mxu0 0.0
    %798 = vmatpush1.msra.mxu0 0.0
    %799 = vmatprep.subr.mxu0 0.0
    %800 = vmatpush1.msra.mxu0 0.0
    %801 = vmatprep.subr.mxu0 0.0
    %802 = vmatpush1.msra.mxu0 0.0
    %803 = vmatprep.mubr.f32.mxu0 0.0
    %v804 = vand.u32 %v322, 4294901760
    %805 = vmatmul.mubr.f32.gmra.mrb[0].mxu0 %v804
    %v806 = vpop.f32.mrb[0].mxu0
    %v807 = vadd.f32 %v729, %v806
    %v808 = vpop.f32.mrb[0].mxu0
    %809 = vmatprep.mubr.f32.mxu0 0.0
    %v810 = vand.u32 %v325, 4294901760
    %811 = vmatmul.mubr.f32.gmra.mrb[0].mxu0 %v810
    %v812 = vpop.f32.mrb[0].mxu0
    %v813 = vadd.f32 %v735, %v812
    %v814 = vpop.f32.mrb[0].mxu0
    %815 = vdwg.mxu0
    %v816 = vlaneseq
    %v817 = vand.u32 %v816, 127
    %vm818 = vcmp.eq.s32.totalorder %v308, %v817
    %vm819 = vcmp.eq.s32.totalorder %v309, %v817
    %v820 = vsel %vm818, %v807, 0.0
    %v821 = vsel %vm819, %v813, 0.0
    %v822 = vsel %vm283, %v820, 0.0
    %v823 = vsel %vm283, %v821, 0.0
    %v824 = vadd.f32 %v822, %v823
    %825 = vadd.xlane.f32.xlu0 %v824
    %v826 = vpop.xlane.xlu0 %825
    %v827 = vrot.slane %v826, 4
    %v828 = vadd.f32 %v826, %v827
    %v829 = vrot.slane %v828, 2
    %v830 = vadd.f32 %v828, %v829
    %v831 = vrot.slane %v830, 1
    %v832 = vadd.f32 %v830, %v831
    %s833 = vtos %v832
    %s834 = ssub.f32 %s305, %s833
    %v835 = vstv %s834
    %vm836 = vcmask 0
    %837 = vst.msk [vmem:[#allocation5] sm:$0x1] %vm836, %v835
    %838 = vst.msk [vmem:[#allocation6] sm:$0x1] %vm836, 0.0
    %p839 = scmp.eq.s32.totalorder 0, 0
    // Predicated region
    $region26: #{tpu_custom_call.1} parent=1 // pred_check
      %p840 = pneg %p839
    $region27: #{tpu_custom_call.1} parent=1 // pred_check_branch
      %842 = sbr.rel (%p840) target = $region29
    $region28: #{tpu_custom_call.1} parent=1 // pred_region
      %v843 = vmul.f32 %v38, %v38
      %v844 = vmul.f32 %v39, %v39
      %v845 = vmul.f32 %v40, %v40
      %v846 = vmul.f32 %v41, %v41
      %v847 = vsel %vm51, %v843, 0.0
      %v848 = vsel %vm51, %v844, 0.0
      %v849 = vadd.f32 %v847, %v848
      %v850 = vsel %vm51, %v845, 0.0
      %v851 = vadd.f32 %v849, %v850
      %v852 = vsel %vm51, %v846, 0.0
      %v853 = vadd.f32 %v851, %v852
      %854 = vadd.xlane.f32.xlu0 %v853
      %v855 = vpop.xlane.xlu0 %854
      %v856 = vrot.slane %v855, 4
      %v857 = vadd.f32 %v855, %v856
      %v858 = vrot.slane %v857, 2
      %v859 = vadd.f32 %v857, %v858
      %v860 = vrot.slane %v859, 1
      %v861 = vadd.f32 %v859, %v860
      %s862 = vtos %v861
      %v863 = vstv %s862
      %864 = vst.msk [vmem:[#allocation6] sm:$0x1] %vm836, %v863
    $region29: #{tpu_custom_call.1} parent=1 // pred_fallthru
      _
    // Predicated region
    $region30: #{tpu_custom_call.1} parent=1 // pred_check
      _
    $region31: #{tpu_custom_call.1} parent=1 // pred_check_branch
      %866 = sbr.rel (0) target = $region33
    $region32: #{tpu_custom_call.1} parent=1 // pred_region
      %s868 = ssub.s32 16, 16
      %869 = vsyncadd [#allocation4], %s868
      %s871 = sshll.u32 [#allocation5], 4
      %s872 = int_to_ptr.vmem [resolvable:$true] %s871
      %874 = dma.vmem_to_hbm [thread:$0]  %s872, 16, %s5, [#allocation4]
    $region33: #{tpu_custom_call.1} parent=1 // pred_fallthru
      _
    // Predicated region
    $region34: #{tpu_custom_call.1} parent=1 // pred_check
      _
    $region35: #{tpu_custom_call.1} parent=1 // pred_check_branch
      %876 = sbr.rel (0) target = $region37
    $region36: #{tpu_custom_call.1} parent=1 // pred_region
      %s878 = ssub.s32 16, 16
      %879 = vsyncadd [#allocation7], %s878
      %s881 = sshll.u32 [#allocation6], 4
      %s882 = int_to_ptr.vmem [resolvable:$true] %s881
      %884 = dma.vmem_to_hbm [thread:$0]  %s882, 16, %s6, [#allocation7]
    $region37: #{tpu_custom_call.1} parent=1 // pred_fallthru
      _
    // Predicated region
    $region38: #{tpu_custom_call.1} parent=1 // pred_check
      _
    $region39: #{tpu_custom_call.1} parent=1 // pred_check_branch
      %886 = sbr.rel (0) target = $region41
    $region40: #{tpu_custom_call.1} parent=1 // pred_region
      %887 = dma.done [#allocation4], 16
    $region41: #{tpu_custom_call.1} parent=1 // pred_fallthru
      _
    // Predicated region
    $region42: #{tpu_custom_call.1} parent=1 // pred_check
      _
    $region43: #{tpu_custom_call.1} parent=1 // pred_check_branch
      %889 = sbr.rel (0) target = $region45
    $region44: #{tpu_custom_call.1} parent=1 // pred_region
      %890 = dma.done [#allocation7], 16
    $region45: #{tpu_custom_call.1} parent=1 // pred_fallthru
      _
    %891 = vsyncpa [#allocation3], 1
    %892 = vsyncpa [#allocation4], 1
    %893 = vsyncpa [#allocation7], 1

// kernel: tpu_custom_call.1
$region0: #{tpu_custom_call.1}
  #allocation0 [shape = 'u32[]', space=smem, size = 0x4, offset = 0x4, fixed_abs, tag = 'smem constant byte address 0x4 - core index']
  #allocation1 [shape = 'u32[144,128]{1,0:T(1,128)}', space=vmem, size = 0x12000, scoped, tag = 'internal scratch']
  %s0 = inlined_call_operand.vmem [shape: f32[8,32], index: 0, kind: input, shape index: {}]
  %s1 = inlined_call_operand.vmem [shape: f32[32,32], index: 1, kind: input, shape index: {}]
  %s2 = inlined_call_operand.hbm [shape: f32[32,32], index: 2, kind: input, shape index: {}]
  %s3 = inlined_call_operand.vmem [shape: f32[32,16], index: 3, kind: input, shape index: {}]
  %s4 = inlined_call_operand.vmem [shape: s32[1,8], index: 4, kind: input, shape index: {}]
  %s5 = inlined_call_operand.hbm [shape: f32[1,1,1], index: 5, kind: output, shape index: {0}]
  %s6 = inlined_call_operand.hbm [shape: f32[1,1,1], index: 6, kind: output, shape index: {1}]
  %7 = xla_tuple %s5, %s6
  %s8 = sld [smem:[#allocation0]]
  $region46: #{tpu_custom_call.1} parent=0
    _
  %s10 = ssub.s32 1, %s8
  %s11 = scalar_select 0, %s10, %s8
  $region1: #{tpu_custom_call.1} parent=0
    #allocation2 [shape = 'u8[16384]{0}', space=vmem, size = 0x4000, scoped, tag = 'input window, operand 2, single buffered']
    #allocation3 [shape = 's32[1]{0}', space=sflag, size = 0x4, scoped, tag = 'scoped memory for tpu_custom_call.1']
    #allocation4 [shape = 's32[1]{0}', space=sflag, size = 0x4, scoped, tag = 'scoped memory for tpu_custom_call.1']
    #allocation5 [shape = 'u8[512]{0}', space=vmem, size = 0x400, scoped, tag = 'output window, operand 0, single buffered']
    #allocation6 [shape = 'u8[512]{0}', space=vmem, size = 0x400, scoped, tag = 'output window, operand 1, single buffered']
    #allocation7 [shape = 's32[1]{0}', space=sflag, size = 0x4, scoped, tag = 'scoped memory for tpu_custom_call.1']
    %12 = vsyncpa [#allocation3], 0
    %13 = vsyncpa [#allocation4], 0
    %14 = vsyncpa [#allocation7], 0
    // Predicated region
    $region2: #{tpu_custom_call.1} parent=1 // pred_check
      _
    $region3: #{tpu_custom_call.1} parent=1 // pred_check_branch
      %16 = sbr.rel (0) target = $region5
    $region4: #{tpu_custom_call.1} parent=1 // pred_region
      _
    $region5: #{tpu_custom_call.1} parent=1 // pred_fallthru
      _
    // Predicated region
    $region6: #{tpu_custom_call.1} parent=1 // pred_check
      _
    $region7: #{tpu_custom_call.1} parent=1 // pred_check_branch
      %18 = sbr.rel (0) target = $region9
    $region8: #{tpu_custom_call.1} parent=1 // pred_region
      _
    $region9: #{tpu_custom_call.1} parent=1 // pred_fallthru
      _
    // Predicated region
    $region10: #{tpu_custom_call.1} parent=1 // pred_check
      _
    $region11: #{tpu_custom_call.1} parent=1 // pred_check_branch
      %20 = sbr.rel (0) target = $region13
    $region12: #{tpu_custom_call.1} parent=1 // pred_region
      %s22 = ssub.s32 512, 512
      %23 = vsyncadd [#allocation3], %s22
      %s24 = sshll.u32 [#allocation2], 4
      %s25 = int_to_ptr.vmem [resolvable:$true] %s24
      %30 = dma.hbm_to_vmem [thread:$0]  %s2, 512, %s25, [#allocation3], 128, 128, 8
    $region13: #{tpu_custom_call.1} parent=1 // pred_fallthru
      _
    // Predicated region
    $region14: #{tpu_custom_call.1} parent=1 // pred_check
      _
    $region15: #{tpu_custom_call.1} parent=1 // pred_check_branch
      %32 = sbr.rel (0) target = $region17
    $region16: #{tpu_custom_call.1} parent=1 // pred_region
      _
    $region17: #{tpu_custom_call.1} parent=1 // pred_fallthru
      _
    // Predicated region
    $region18: #{tpu_custom_call.1} parent=1 // pred_check
      _
    $region19: #{tpu_custom_call.1} parent=1 // pred_check_branch
      %34 = sbr.rel (0) target = $region21
    $region20: #{tpu_custom_call.1} parent=1 // pred_region
      _
    $region21: #{tpu_custom_call.1} parent=1 // pred_fallthru
      _
    // Predicated region
    $region22: #{tpu_custom_call.1} parent=1 // pred_check
      _
    $region23: #{tpu_custom_call.1} parent=1 // pred_check_branch
      %36 = sbr.rel (0) target = $region25
    $region24: #{tpu_custom_call.1} parent=1 // pred_region
      %37 = dma.done [#allocation3], 512
    $region25: #{tpu_custom_call.1} parent=1 // pred_fallthru
      _
    %v38 = vld [vmem:[%s1] sm:$0xff]
    %v39 = vld [vmem:[%s1 + $0x8] sm:$0xff]
    %v40 = vld [vmem:[%s1 + $0x10] sm:$0xff]
    %v41 = vld [vmem:[%s1 + $0x18] sm:$0xff]
    %v42 = vld [vmem:[#allocation2] sm:$0xff]
    %v43 = vld [vmem:[#allocation2 + $0x8] sm:$0xff]
    %v44 = vld [vmem:[#allocation2 + $0x10] sm:$0xff]
    %v45 = vld [vmem:[#allocation2 + $0x18] sm:$0xff]
    %v46 = vld [vmem:[%s3] sm:$0xff]
    %v47 = vld [vmem:[%s3 + $0x8] sm:$0xff]
    %v48 = vld [vmem:[%s3 + $0x10] sm:$0xff]
    %v49 = vld [vmem:[%s3 + $0x18] sm:$0xff]
    %v50 = vld [vmem:[%s0] sm:$0xff]
    %vm51 = vcmask 261120
    %v53 = vsel %vm51, %v50, 0
    %55 = vmatprep.subr.mxu0 0.0
    %56 = vmatpush1.msra.mxu0 %v38
    %57 = vmatprep.subr.mxu0 0.0
    %58 = vmatpush1.msra.mxu0 %v39
    %59 = vmatprep.subr.mxu0 0.0
    %60 = vmatpush1.msra.mxu0 %v40
    %61 = vmatprep.subr.mxu0 0.0
    %62 = vmatpush1.msra.mxu0 %v41
    %63 = vmatprep.subr.mxu0 0.0
    %64 = vmatpush1.msra.mxu0 0.0
    %65 = vmatprep.subr.mxu0 0.0
    %66 = vmatpush1.msra.mxu0 0.0
    %67 = vmatprep.subr.mxu0 0.0
    %68 = vmatpush1.msra.mxu0 0.0
    %69 = vmatprep.subr.mxu0 0.0
    %70 = vmatpush1.msra.mxu0 0.0
    %71 = vmatprep.subr.mxu0 0.0
    %72 = vmatpush1.msra.mxu0 0.0
    %73 = vmatprep.subr.mxu0 0.0
    %74 = vmatpush1.msra.mxu0 0.0
    %75 = vmatprep.subr.mxu0 0.0
    %76 = vmatpush1.msra.mxu0 0.0
    %77 = vmatprep.subr.mxu0 0.0
    %78 = vmatpush1.msra.mxu0 0.0
    %79 = vmatprep.subr.mxu0 0.0
    %80 = vmatpush1.msra.mxu0 0.0
    %81 = vmatprep.subr.mxu0 0.0
    %82 = vmatpush1.msra.mxu0 0.0
    %83 = vmatprep.subr.mxu0 0.0
    %84 = vmatpush1.msra.mxu0 0.0
    %85 = vmatprep.subr.mxu0 0.0
    %86 = vmatpush1.msra.mxu0 0.0
    %87 = vmatprep.subr.mxu0 0.0
    %88 = vmatpush1.msra.mxu0 0.0
    %89 = vmatprep.subr.mxu0 0.0
    %90 = vmatpush1.msra.mxu0 0.0
    %91 = vmatprep.subr.mxu0 0.0
    %92 = vmatpush1.msra.mxu0 0.0
    %93 = vmatprep.subr.mxu0 0.0
    %94 = vmatpush1.msra.mxu0 0.0
    %95 = vmatprep.subr.mxu0 0.0
    %96 = vmatpush1.msra.mxu0 0.0
    %97 = vmatprep.subr.mxu0 0.0
    %98 = vmatpush1.msra.mxu0 0.0
    %99 = vmatprep.subr.mxu0 0.0
    %100 = vmatpush1.msra.mxu0 0.0
    %101 = vmatprep.subr.mxu0 0.0
    %102 = vmatpush1.msra.mxu0 0.0
    %103 = vmatprep.subr.mxu0 0.0
    %104 = vmatpush1.msra.mxu0 0.0
    %105 = vmatprep.subr.mxu0 0.0
    %106 = vmatpush1.msra.mxu0 0.0
    %107 = vmatprep.subr.mxu0 0.0
    %108 = vmatpush1.msra.mxu0 0.0
    %109 = vmatprep.subr.mxu0 0.0
    %110 = vmatpush1.msra.mxu0 0.0
    %111 = vmatprep.subr.mxu0 0.0
    %112 = vmatpush1.msra.mxu0 0.0
    %113 = vmatprep.subr.mxu0 0.0
    %114 = vmatpush1.msra.mxu0 0.0
    %115 = vmatprep.subr.mxu0 0.0
    %116 = vmatpush1.msra.mxu0 0.0
    %117 = vmatprep.subr.mxu0 0.0
    %118 = vmatpush1.msra.mxu0 0.0
    %119 = vmatprep.mubr.f32.mxu0 0.0
    %120 = vmatmul.mubr.f32.gmra.mrb[0].mxu0 %v53
    %v121 = vpop.f32.mrb[0].mxu0
    %v122 = vadd.f32 0.0, %v121
    %v123 = vpop.f32.mrb[0].mxu0
    %124 = vdwg.mxu0
    %v125 = vxor.u32 %v122, 2147483648
    %v126 = vmul.f32 %v125, 1.442695
    %v127 = vpow.pop %v126
    %v128 = vadd.f32 %v127, 1.0
    %v129 = vrcp.pop %v128
    %v130 = vmul.f32 1.0, %v129
    %v132 = vsel %vm51, %v130, 0
    %134 = vmatprep.subr.mxu0 0.0
    %135 = vmatpush1.msra.mxu0 %v42
    %136 = vmatprep.subr.mxu0 0.0
    %137 = vmatpush1.msra.mxu0 %v43
    %138 = vmatprep.subr.mxu0 0.0
    %139 = vmatpush1.msra.mxu0 %v44
    %140 = vmatprep.subr.mxu0 0.0
    %141 = vmatpush1.msra.mxu0 %v45
    %142 = vmatprep.subr.mxu0 0.0
    %143 = vmatpush1.msra.mxu0 0.0
    %144 = vmatprep.subr.mxu0 0.0
    %145 = vmatpush1.msra.mxu0 0.0
    %146 = vmatprep.subr.mxu0 0.0
    %147 = vmatpush1.msra.mxu0 0.0
    %148 = vmatprep.subr.mxu0 0.0
    %149 = vmatpush1.msra.mxu0 0.0
    %150 = vmatprep.subr.mxu0 0.0
    %151 = vmatpush1.msra.mxu0 0.0
    %152 = vmatprep.subr.mxu0 0.0
    %153 = vmatpush1.msra.mxu0 0.0
    %154 = vmatprep.subr.mxu0 0.0
    %155 = vmatpush1.msra.mxu0 0.0
    %156 = vmatprep.subr.mxu0 0.0
    %157 = vmatpush1.msra.mxu0 0.0
    %158 = vmatprep.subr.mxu0 0.0
    %159 = vmatpush1.msra.mxu0 0.0
    %160 = vmatprep.subr.mxu0 0.0
    %161 = vmatpush1.msra.mxu0 0.0
    %162 = vmatprep.subr.mxu0 0.0
    %163 = vmatpush1.msra.mxu0 0.0
    %164 = vmatprep.subr.mxu0 0.0
    %165 = vmatpush1.msra.mxu0 0.0
    %166 = vmatprep.subr.mxu0 0.0
    %167 = vmatpush1.msra.mxu0 0.0
    %168 = vmatprep.subr.mxu0 0.0
    %169 = vmatpush1.msra.mxu0 0.0
    %170 = vmatprep.subr.mxu0 0.0
    %171 = vmatpush1.msra.mxu0 0.0
    %172 = vmatprep.subr.mxu0 0.0
    %173 = vmatpush1.msra.mxu0 0.0
    %174 = vmatprep.subr.mxu0 0.0
    %175 = vmatpush1.msra.mxu0 0.0
    %176 = vmatprep.subr.mxu0 0.0
    %177 = vmatpush1.msra.mxu0 0.0
    %178 = vmatprep.subr.mxu0 0.0
    %179 = vmatpush1.msra.mxu0 0.0
    %180 = vmatprep.subr.mxu0 0.0
    %181 = vmatpush1.msra.mxu0 0.0
    %182 = vmatprep.subr.mxu0 0.0
    %183 = vmatpush1.msra.mxu0 0.0
    %184 = vmatprep.subr.mxu0 0.0
    %185 = vmatpush1.msra.mxu0 0.0
    %186 = vmatprep.subr.mxu0 0.0
    %187 = vmatpush1.msra.mxu0 0.0
    %188 = vmatprep.subr.mxu0 0.0
    %189 = vmatpush1.msra.mxu0 0.0
    %190 = vmatprep.subr.mxu0 0.0
    %191 = vmatpush1.msra.mxu0 0.0
    %192 = vmatprep.subr.mxu0 0.0
    %193 = vmatpush1.msra.mxu0 0.0
    %194 = vmatprep.subr.mxu0 0.0
    %195 = vmatpush1.msra.mxu0 0.0
    %196 = vmatprep.subr.mxu0 0.0
    %197 = vmatpush1.msra.mxu0 0.0
    %198 = vmatprep.mubr.f32.mxu0 0.0
    %199 = vmatmul.mubr.f32.gmra.mrb[0].mxu0 %v132
    %v200 = vpop.f32.mrb[0].mxu0
    %v201 = vadd.f32 0.0, %v200
    %v202 = vpop.f32.mrb[0].mxu0
    %203 = vdwg.mxu0
    %v204 = vxor.u32 %v201, 2147483648
    %v205 = vmul.f32 %v204, 1.442695
    %v206 = vpow.pop %v205
    %v207 = vadd.f32 %v206, 1.0
    %v208 = vrcp.pop %v207
    %v209 = vmul.f32 1.0, %v208
    %v211 = vsel %vm51, %v209, 0
    %213 = vmatprep.subr.mxu0 0.0
    %214 = vmatpush1.msra.mxu0 %v46
    %215 = vmatprep.subr.mxu0 0.0
    %216 = vmatpush1.msra.mxu0 %v47
    %217 = vmatprep.subr.mxu0 0.0
    %218 = vmatpush1.msra.mxu0 %v48
    %219 = vmatprep.subr.mxu0 0.0
    %220 = vmatpush1.msra.mxu0 %v49
    %221 = vmatprep.subr.mxu0 0.0
    %222 = vmatpush1.msra.mxu0 0.0
    %223 = vmatprep.subr.mxu0 0.0
    %224 = vmatpush1.msra.mxu0 0.0
    %225 = vmatprep.subr.mxu0 0.0
    %226 = vmatpush1.msra.mxu0 0.0
    %227 = vmatprep.subr.mxu0 0.0
    %228 = vmatpush1.msra.mxu0 0.0
    %229 = vmatprep.subr.mxu0 0.0
    %230 = vmatpush1.msra.mxu0 0.0
    %231 = vmatprep.subr.mxu0 0.0
    %232 = vmatpush1.msra.mxu0 0.0
    %233 = vmatprep.subr.mxu0 0.0
    %234 = vmatpush1.msra.mxu0 0.0
    %235 = vmatprep.subr.mxu0 0.0
    %236 = vmatpush1.msra.mxu0 0.0
    %237 = vmatprep.subr.mxu0 0.0
    %238 = vmatpush1.msra.mxu0 0.0
    %239 = vmatprep.subr.mxu0 0.0
    %240 = vmatpush1.msra.mxu0 0.0
    %241 = vmatprep.subr.mxu0 0.0
    %242 = vmatpush1.msra.mxu0 0.0
    %243 = vmatprep.subr.mxu0 0.0
    %244 = vmatpush1.msra.mxu0 0.0
    %245 = vmatprep.subr.mxu0 0.0
    %246 = vmatpush1.msra.mxu0 0.0
    %247 = vmatprep.subr.mxu0 0.0
    %248 = vmatpush1.msra.mxu0 0.0
    %249 = vmatprep.subr.mxu0 0.0
    %250 = vmatpush1.msra.mxu0 0.0
    %251 = vmatprep.subr.mxu0 0.0
    %252 = vmatpush1.msra.mxu0 0.0
    %253 = vmatprep.subr.mxu0 0.0
    %254 = vmatpush1.msra.mxu0 0.0
    %255 = vmatprep.subr.mxu0 0.0
    %256 = vmatpush1.msra.mxu0 0.0
    %257 = vmatprep.subr.mxu0 0.0
    %258 = vmatpush1.msra.mxu0 0.0
    %259 = vmatprep.subr.mxu0 0.0
    %260 = vmatpush1.msra.mxu0 0.0
    %261 = vmatprep.subr.mxu0 0.0
    %262 = vmatpush1.msra.mxu0 0.0
    %263 = vmatprep.subr.mxu0 0.0
    %264 = vmatpush1.msra.mxu0 0.0
    %265 = vmatprep.subr.mxu0 0.0
    %266 = vmatpush1.msra.mxu0 0.0
    %267 = vmatprep.subr.mxu0 0.0
    %268 = vmatpush1.msra.mxu0 0.0
    %269 = vmatprep.subr.mxu0 0.0
    %270 = vmatpush1.msra.mxu0 0.0
    %271 = vmatprep.subr.mxu0 0.0
    %272 = vmatpush1.msra.mxu0 0.0
    %273 = vmatprep.subr.mxu0 0.0
    %274 = vmatpush1.msra.mxu0 0.0
    %275 = vmatprep.subr.mxu0 0.0
    %276 = vmatpush1.msra.mxu0 0.0
    %277 = vmatprep.mubr.f32.mxu0 0.0
    %278 = vmatmul.mubr.f32.gmra.mrb[0].mxu0 %v211
    %v279 = vpop.f32.mrb[0].mxu0
    %v280 = vadd.f32 0.0, %v279
    %v281 = vpop.f32.mrb[0].mxu0
    %282 = vdwg.mxu0
    %vm283 = vcmask 130048
    %v284 = vsel %vm283, %v280, -inf
    %285 = vmax.xlane.f32.xlu0 %v284
    %v286 = vpop.xlane.xlu0 %285
    %v287 = vsub.f32 %v280, %v286
    %v288 = vmul.f32 %v287, 1.442695
    %v289 = vpow.pop %v288
    %v290 = vsel %vm283, %v289, 0.0
    %291 = vadd.xlane.f32.xlu0 %v290
    %v292 = vpop.xlane.xlu0 %291
    %v293 = vlog2.pop %v292
    %v294 = vmul.f32 %v293, 0.6931472
    %vm295 = vcmask 7168
    %v296 = vsel %vm295, %v294, 0.0
    %297 = vadd.xlane.f32.xlu0 %v296
    %v298 = vpop.xlane.xlu0 %297
    %v299 = vrot.slane %v298, 4
    %v300 = vadd.f32 %v298, %v299
    %v301 = vrot.slane %v300, 2
    %v302 = vadd.f32 %v300, %v301
    %v303 = vrot.slane %v302, 1
    %v304 = vadd.f32 %v302, %v303
    %s305 = vtos %v304
    %v306 = vld [vmem:[%s4] sm:$0x1]
    %v307 = vlaneseq
    %v308 = vshrl.u32 %v307, 7
    %v309 = vadd.s32 %v308, 8
    %v310 = vlaneseq
    %v311 = vshrl.u32 %v310, 7
    %v312 = vsub.s32 0, %v311
    %v313 = vrot.slane %v306, %v312
    %vm314 = vcmp.eq.s32.totalorder %v308, %v313
    %vm315 = vcmp.eq.s32.totalorder %v309, %v313
    %v316 = vsel %vm314, 1, 0
    %v317 = vsel %vm315, 1, 0
    %v318 = vcvt.s32.f32 %v316
    %v319 = vcvt.s32.f32 %v317
    %vm320 = vcmask 64512
    %v322 = vsel %vm320, %v318, 0
    %v325 = vsel %vm320, %v319, 0
    %327 = vmatprep.subr.mxu0 0.0
    %v328 = vand.u32 %v287, 4294901760
    %329 = vmatpush1.msra.mxu0 %v328
    %330 = vmatprep.subr.mxu0 0.0
    %331 = vmatpush1.msra.mxu0 0.0
    %332 = vmatprep.subr.mxu0 0.0
    %333 = vmatpush1.msra.mxu0 0.0
    %334 = vmatprep.subr.mxu0 0.0
    %335 = vmatpush1.msra.mxu0 0.0
    %336 = vmatprep.subr.mxu0 0.0
    %337 = vmatpush1.msra.mxu0 0.0
    %338 = vmatprep.subr.mxu0 0.0
    %339 = vmatpush1.msra.mxu0 0.0
    %340 = vmatprep.subr.mxu0 0.0
    %341 = vmatpush1.msra.mxu0 0.0
    %342 = vmatprep.subr.mxu0 0.0
    %343 = vmatpush1.msra.mxu0 0.0
    %344 = vmatprep.subr.mxu0 0.0
    %345 = vmatpush1.msra.mxu0 0.0
    %346 = vmatprep.subr.mxu0 0.0
    %347 = vmatpush1.msra.mxu0 0.0
    %348 = vmatprep.subr.mxu0 0.0
    %349 = vmatpush1.msra.mxu0 0.0
    %350 = vmatprep.subr.mxu0 0.0
    %351 = vmatpush1.msra.mxu0 0.0
    %352 = vmatprep.subr.mxu0 0.0
    %353 = vmatpush1.msra.mxu0 0.0
    %354 = vmatprep.subr.mxu0 0.0
    %355 = vmatpush1.msra.mxu0 0.0
    %356 = vmatprep.subr.mxu0 0.0
    %357 = vmatpush1.msra.mxu0 0.0
    %358 = vmatprep.subr.mxu0 0.0
    %359 = vmatpush1.msra.mxu0 0.0
    %360 = vmatprep.subr.mxu0 0.0
    %361 = vmatpush1.msra.mxu0 0.0
    %362 = vmatprep.subr.mxu0 0.0
    %363 = vmatpush1.msra.mxu0 0.0
    %364 = vmatprep.subr.mxu0 0.0
    %365 = vmatpush1.msra.mxu0 0.0
    %366 = vmatprep.subr.mxu0 0.0
    %367 = vmatpush1.msra.mxu0 0.0
    %368 = vmatprep.subr.mxu0 0.0
    %369 = vmatpush1.msra.mxu0 0.0
    %370 = vmatprep.subr.mxu0 0.0
    %371 = vmatpush1.msra.mxu0 0.0
    %372 = vmatprep.subr.mxu0 0.0
    %373 = vmatpush1.msra.mxu0 0.0
    %374 = vmatprep.subr.mxu0 0.0
    %375 = vmatpush1.msra.mxu0 0.0
    %376 = vmatprep.subr.mxu0 0.0
    %377 = vmatpush1.msra.mxu0 0.0
    %378 = vmatprep.subr.mxu0 0.0
    %379 = vmatpush1.msra.mxu0 0.0
    %380 = vmatprep.subr.mxu0 0.0
    %381 = vmatpush1.msra.mxu0 0.0
    %382 = vmatprep.subr.mxu0 0.0
    %383 = vmatpush1.msra.mxu0 0.0
    %384 = vmatprep.subr.mxu0 0.0
    %385 = vmatpush1.msra.mxu0 0.0
    %386 = vmatprep.subr.mxu0 0.0
    %387 = vmatpush1.msra.mxu0 0.0
    %388 = vmatprep.subr.mxu0 0.0
    %389 = vmatpush1.msra.mxu0 0.0
    %390 = vmatprep.subr.mxu0 0.0
    %391 = vmatpush1.msra.mxu0 0.0
    %392 = vmatprep.mubr.f32.mxu0 0.0
    %v393 = vand.u32 %v322, 4294901760
    %v394 = vsub.f32 %v322, %v393
    %v395 = vand.u32 %v394, 4294901760
    %v396 = vsub.f32 %v394, %v395
    %v397 = vand.u32 %v396, 4294901760
    %398 = vmatmul.mubr.f32.gmra.mrb[0].mxu0 %v397
    %v399 = vpop.f32.mrb[0].mxu0
    %v400 = vadd.f32 0.0, %v399
    %v401 = vpop.f32.mrb[0].mxu0
    %402 = vmatprep.mubr.f32.mxu0 0.0
    %v403 = vand.u32 %v325, 4294901760
    %v404 = vsub.f32 %v325, %v403
    %v405 = vand.u32 %v404, 4294901760
    %v406 = vsub.f32 %v404, %v405
    %v407 = vand.u32 %v406, 4294901760
    %408 = vmatmul.mubr.f32.gmra.mrb[0].mxu0 %v407
    %v409 = vpop.f32.mrb[0].mxu0
    %v410 = vadd.f32 0.0, %v409
    %v411 = vpop.f32.mrb[0].mxu0
    %412 = vdwg.mxu0
    %413 = vmatprep.subr.mxu0 0.0
    %v414 = vand.u32 %v287, 4294901760
    %v415 = vsub.f32 %v287, %v414
    %v416 = vand.u32 %v415, 4294901760
    %v417 = vsub.f32 %v415, %v416
    %v418 = vand.u32 %v417, 4294901760
    %419 = vmatpush1.msra.mxu0 %v418
    %420 = vmatprep.subr.mxu0 0.0
    %421 = vmatpush1.msra.mxu0 0.0
    %422 = vmatprep.subr.mxu0 0.0
    %423 = vmatpush1.msra.mxu0 0.0
    %424 = vmatprep.subr.mxu0 0.0
    %425 = vmatpush1.msra.mxu0 0.0
    %426 = vmatprep.subr.mxu0 0.0
    %427 = vmatpush1.msra.mxu0 0.0
    %428 = vmatprep.subr.mxu0 0.0
    %429 = vmatpush1.msra.mxu0 0.0
    %430 = vmatprep.subr.mxu0 0.0
    %431 = vmatpush1.msra.mxu0 0.0
    %432 = vmatprep.subr.mxu0 0.0
    %433 = vmatpush1.msra.mxu0 0.0
    %434 = vmatprep.subr.mxu0 0.0
    %435 = vmatpush1.msra.mxu0 0.0
    %436 = vmatprep.subr.mxu0 0.0
    %437 = vmatpush1.msra.mxu0 0.0
    %438 = vmatprep.subr.mxu0 0.0
    %439 = vmatpush1.msra.mxu0 0.0
    %440 = vmatprep.subr.mxu0 0.0
    %441 = vmatpush1.msra.mxu0 0.0
    %442 = vmatprep.subr.mxu0 0.0
    %443 = vmatpush1.msra.mxu0 0.0
    %444 = vmatprep.subr.mxu0 0.0
    %445 = vmatpush1.msra.mxu0 0.0
    %446 = vmatprep.subr.mxu0 0.0
    %447 = vmatpush1.msra.mxu0 0.0
    %448 = vmatprep.subr.mxu0 0.0
    %449 = vmatpush1.msra.mxu0 0.0
    %450 = vmatprep.subr.mxu0 0.0
    %451 = vmatpush1.msra.mxu0 0.0
    %452 = vmatprep.subr.mxu0 0.0
    %453 = vmatpush1.msra.mxu0 0.0
    %454 = vmatprep.subr.mxu0 0.0
    %455 = vmatpush1.msra.mxu0 0.0
    %456 = vmatprep.subr.mxu0 0.0
    %457 = vmatpush1.msra.mxu0 0.0
    %458 = vmatprep.subr.mxu0 0.0
    %459 = vmatpush1.msra.mxu0 0.0
    %460 = vmatprep.subr.mxu0 0.0
    %461 = vmatpush1.msra.mxu0 0.0
    %462 = vmatprep.subr.mxu0 0.0
    %463 = vmatpush1.msra.mxu0 0.0
    %464 = vmatprep.subr.mxu0 0.0
    %465 = vmatpush1.msra.mxu0 0.0
    %466 = vmatprep.subr.mxu0 0.0
    %467 = vmatpush1.msra.mxu0 0.0
    %468 = vmatprep.subr.mxu0 0.0
    %469 = vmatpush1.msra.mxu0 0.0
    %470 = vmatprep.subr.mxu0 0.0
    %471 = vmatpush1.msra.mxu0 0.0
    %472 = vmatprep.subr.mxu0 0.0
    %473 = vmatpush1.msra.mxu0 0.0
    %474 = vmatprep.subr.mxu0 0.0
    %475 = vmatpush1.msra.mxu0 0.0
    %476 = vmatprep.subr.mxu0 0.0
    %477 = vmatpush1.msra.mxu0 0.0
    %478 = vmatprep.subr.mxu0 0.0
    %479 = vmatpush1.msra.mxu0 0.0
    %480 = vmatprep.subr.mxu0 0.0
    %481 = vmatpush1.msra.mxu0 0.0
    %482 = vmatprep.mubr.f32.mxu0 0.0
    %v483 = vand.u32 %v322, 4294901760
    %484 = vmatmul.mubr.f32.gmra.mrb[0].mxu0 %v483
    %v485 = vpop.f32.mrb[0].mxu0
    %v486 = vadd.f32 %v400, %v485
    %v487 = vpop.f32.mrb[0].mxu0
    %488 = vmatprep.mubr.f32.mxu0 0.0
    %v489 = vand.u32 %v325, 4294901760
    %490 = vmatmul.mubr.f32.gmra.mrb[0].mxu0 %v489
    %v491 = vpop.f32.mrb[0].mxu0
    %v492 = vadd.f32 %v410, %v491
    %v493 = vpop.f32.mrb[0].mxu0
    %494 = vdwg.mxu0
    %495 = vmatprep.subr.mxu0 0.0
    %v496 = vand.u32 %v287, 4294901760
    %v497 = vsub.f32 %v287, %v496
    %498 = vmatpush1.msra.mxu0 %v497
    %499 = vmatprep.subr.mxu0 0.0
    %500 = vmatpush1.msra.mxu0 0.0
    %501 = vmatprep.subr.mxu0 0.0
    %502 = vmatpush1.msra.mxu0 0.0
    %503 = vmatprep.subr.mxu0 0.0
    %504 = vmatpush1.msra.mxu0 0.0
    %505 = vmatprep.subr.mxu0 0.0
    %506 = vmatpush1.msra.mxu0 0.0
    %507 = vmatprep.subr.mxu0 0.0
    %508 = vmatpush1.msra.mxu0 0.0
    %509 = vmatprep.subr.mxu0 0.0
    %510 = vmatpush1.msra.mxu0 0.0
    %511 = vmatprep.subr.mxu0 0.0
    %512 = vmatpush1.msra.mxu0 0.0
    %513 = vmatprep.subr.mxu0 0.0
    %514 = vmatpush1.msra.mxu0 0.0
    %515 = vmatprep.subr.mxu0 0.0
    %516 = vmatpush1.msra.mxu0 0.0
    %517 = vmatprep.subr.mxu0 0.0
    %518 = vmatpush1.msra.mxu0 0.0
    %519 = vmatprep.subr.mxu0 0.0
    %520 = vmatpush1.msra.mxu0 0.0
    %521 = vmatprep.subr.mxu0 0.0
    %522 = vmatpush1.msra.mxu0 0.0
    %523 = vmatprep.subr.mxu0 0.0
    %524 = vmatpush1.msra.mxu0 0.0
    %525 = vmatprep.subr.mxu0 0.0
    %526 = vmatpush1.msra.mxu0 0.0
    %527 = vmatprep.subr.mxu0 0.0
    %528 = vmatpush1.msra.mxu0 0.0
    %529 = vmatprep.subr.mxu0 0.0
    %530 = vmatpush1.msra.mxu0 0.0
    %531 = vmatprep.subr.mxu0 0.0
    %532 = vmatpush1.msra.mxu0 0.0
    %533 = vmatprep.subr.mxu0 0.0
    %534 = vmatpush1.msra.mxu0 0.0
    %535 = vmatprep.subr.mxu0 0.0
    %536 = vmatpush1.msra.mxu0 0.0
    %537 = vmatprep.subr.mxu0 0.0
    %538 = vmatpush1.msra.mxu0 0.0
    %539 = vmatprep.subr.mxu0 0.0
    %540 = vmatpush1.msra.mxu0 0.0
    %541 = vmatprep.subr.mxu0 0.0
    %542 = vmatpush1.msra.mxu0 0.0
    %543 = vmatprep.subr.mxu0 0.0
    %544 = vmatpush1.msra.mxu0 0.0
    %545 = vmatprep.subr.mxu0 0.0
    %546 = vmatpush1.msra.mxu0 0.0
    %547 = vmatprep.subr.mxu0 0.0
    %548 = vmatpush1.msra.mxu0 0.0
    %549 = vmatprep.subr.mxu0 0.0
    %550 = vmatpush1.msra.mxu0 0.0
    %551 = vmatprep.subr.mxu0 0.0
    %552 = vmatpush1.msra.mxu0 0.0
    %553 = vmatprep.subr.mxu0 0.0
    %554 = vmatpush1.msra.mxu0 0.0
    %555 = vmatprep.subr.mxu0 0.0
    %556 = vmatpush1.msra.mxu0 0.0
    %557 = vmatprep.subr.mxu0 0.0
    %558 = vmatpush1.msra.mxu0 0.0
    %559 = vmatprep.subr.mxu0 0.0
    %560 = vmatpush1.msra.mxu0 0.0
    %561 = vmatprep.mubr.f32.mxu0 0.0
    %v562 = vand.u32 %v322, 4294901760
    %v563 = vsub.f32 %v322, %v562
    %564 = vmatmul.mubr.f32.gmra.mrb[0].mxu0 %v563
    %v565 = vpop.f32.mrb[0].mxu0
    %v566 = vadd.f32 %v486, %v565
    %v567 = vpop.f32.mrb[0].mxu0
    %568 = vmatprep.mubr.f32.mxu0 0.0
    %v569 = vand.u32 %v325, 4294901760
    %v570 = vsub.f32 %v325, %v569
    %571 = vmatmul.mubr.f32.gmra.mrb[0].mxu0 %v570
    %v572 = vpop.f32.mrb[0].mxu0
    %v573 = vadd.f32 %v492, %v572
    %v574 = vpop.f32.mrb[0].mxu0
    %575 = vdwg.mxu0
    %576 = vmatprep.subr.mxu0 0.0
    %v577 = vand.u32 %v287, 4294901760
    %578 = vmatpush1.msra.mxu0 %v577
    %579 = vmatprep.subr.mxu0 0.0
    %580 = vmatpush1.msra.mxu0 0.0
    %581 = vmatprep.subr.mxu0 0.0
    %582 = vmatpush1.msra.mxu0 0.0
    %583 = vmatprep.subr.mxu0 0.0
    %584 = vmatpush1.msra.mxu0 0.0
    %585 = vmatprep.subr.mxu0 0.0
    %586 = vmatpush1.msra.mxu0 0.0
    %587 = vmatprep.subr.mxu0 0.0
    %588 = vmatpush1.msra.mxu0 0.0
    %589 = vmatprep.subr.mxu0 0.0
    %590 = vmatpush1.msra.mxu0 0.0
    %591 = vmatprep.subr.mxu0 0.0
    %592 = vmatpush1.msra.mxu0 0.0
    %593 = vmatprep.subr.mxu0 0.0
    %594 = vmatpush1.msra.mxu0 0.0
    %595 = vmatprep.subr.mxu0 0.0
    %596 = vmatpush1.msra.mxu0 0.0
    %597 = vmatprep.subr.mxu0 0.0
    %598 = vmatpush1.msra.mxu0 0.0
    %599 = vmatprep.subr.mxu0 0.0
    %600 = vmatpush1.msra.mxu0 0.0
    %601 = vmatprep.subr.mxu0 0.0
    %602 = vmatpush1.msra.mxu0 0.0
    %603 = vmatprep.subr.mxu0 0.0
    %604 = vmatpush1.msra.mxu0 0.0
    %605 = vmatprep.subr.mxu0 0.0
    %606 = vmatpush1.msra.mxu0 0.0
    %607 = vmatprep.subr.mxu0 0.0
    %608 = vmatpush1.msra.mxu0 0.0
    %609 = vmatprep.subr.mxu0 0.0
    %610 = vmatpush1.msra.mxu0 0.0
    %611 = vmatprep.subr.mxu0 0.0
    %612 = vmatpush1.msra.mxu0 0.0
    %613 = vmatprep.subr.mxu0 0.0
    %614 = vmatpush1.msra.mxu0 0.0
    %615 = vmatprep.subr.mxu0 0.0
    %616 = vmatpush1.msra.mxu0 0.0
    %617 = vmatprep.subr.mxu0 0.0
    %618 = vmatpush1.msra.mxu0 0.0
    %619 = vmatprep.subr.mxu0 0.0
    %620 = vmatpush1.msra.mxu0 0.0
    %621 = vmatprep.subr.mxu0 0.0
    %622 = vmatpush1.msra.mxu0 0.0
    %623 = vmatprep.subr.mxu0 0.0
    %624 = vmatpush1.msra.mxu0 0.0
    %625 = vmatprep.subr.mxu0 0.0
    %626 = vmatpush1.msra.mxu0 0.0
    %627 = vmatprep.subr.mxu0 0.0
    %628 = vmatpush1.msra.mxu0 0.0
    %629 = vmatprep.subr.mxu0 0.0
    %630 = vmatpush1.msra.mxu0 0.0
    %631 = vmatprep.subr.mxu0 0.0
    %632 = vmatpush1.msra.mxu0 0.0
    %633 = vmatprep.subr.mxu0 0.0
    %634 = vmatpush1.msra.mxu0 0.0
    %635 = vmatprep.subr.mxu0 0.0
    %636 = vmatpush1.msra.mxu0 0.0
    %637 = vmatprep.subr.mxu0 0.0
    %638 = vmatpush1.msra.mxu0 0.0
    %639 = vmatprep.subr.mxu0 0.0
    %640 = vmatpush1.msra.mxu0 0.0
    %641 = vmatprep.mubr.f32.mxu0 0.0
    %v642 = vand.u32 %v322, 4294901760
    %v643 = vsub.f32 %v322, %v642
    %v644 = vand.u32 %v643, 4294901760
    %645 = vmatmul.mubr.f32.gmra.mrb[0].mxu0 %v644
    %v646 = vpop.f32.mrb[0].mxu0
    %v647 = vadd.f32 %v566, %v646
    %v648 = vpop.f32.mrb[0].mxu0
    %649 = vmatprep.mubr.f32.mxu0 0.0
    %v650 = vand.u32 %v325, 4294901760
    %v651 = vsub.f32 %v325, %v650
    %v652 = vand.u32 %v651, 4294901760
    %653 = vmatmul.mubr.f32.gmra.mrb[0].mxu0 %v652
    %v654 = vpop.f32.mrb[0].mxu0
    %v655 = vadd.f32 %v573, %v654
    %v656 = vpop.f32.mrb[0].mxu0
    %657 = vdwg.mxu0
    %658 = vmatprep.subr.mxu0 0.0
    %v659 = vand.u32 %v287, 4294901760
    %v660 = vsub.f32 %v287, %v659
    %v661 = vand.u32 %v660, 4294901760
    %662 = vmatpush1.msra.mxu0 %v661
    %663 = vmatprep.subr.mxu0 0.0
    %664 = vmatpush1.msra.mxu0 0.0
    %665 = vmatprep.subr.mxu0 0.0
    %666 = vmatpush1.msra.mxu0 0.0
    %667 = vmatprep.subr.mxu0 0.0
    %668 = vmatpush1.msra.mxu0 0.0
    %669 = vmatprep.subr.mxu0 0.0
    %670 = vmatpush1.msra.mxu0 0.0
    %671 = vmatprep.subr.mxu0 0.0
    %672 = vmatpush1.msra.mxu0 0.0
    %673 = vmatprep.subr.mxu0 0.0
    %674 = vmatpush1.msra.mxu0 0.0
    %675 = vmatprep.subr.mxu0 0.0
    %676 = vmatpush1.msra.mxu0 0.0
    %677 = vmatprep.subr.mxu0 0.0
    %678 = vmatpush1.msra.mxu0 0.0
    %679 = vmatprep.subr.mxu0 0.0
    %680 = vmatpush1.msra.mxu0 0.0
    %681 = vmatprep.subr.mxu0 0.0
    %682 = vmatpush1.msra.mxu0 0.0
    %683 = vmatprep.subr.mxu0 0.0
    %684 = vmatpush1.msra.mxu0 0.0
    %685 = vmatprep.subr.mxu0 0.0
    %686 = vmatpush1.msra.mxu0 0.0
    %687 = vmatprep.subr.mxu0 0.0
    %688 = vmatpush1.msra.mxu0 0.0
    %689 = vmatprep.subr.mxu0 0.0
    %690 = vmatpush1.msra.mxu0 0.0
    %691 = vmatprep.subr.mxu0 0.0
    %692 = vmatpush1.msra.mxu0 0.0
    %693 = vmatprep.subr.mxu0 0.0
    %694 = vmatpush1.msra.mxu0 0.0
    %695 = vmatprep.subr.mxu0 0.0
    %696 = vmatpush1.msra.mxu0 0.0
    %697 = vmatprep.subr.mxu0 0.0
    %698 = vmatpush1.msra.mxu0 0.0
    %699 = vmatprep.subr.mxu0 0.0
    %700 = vmatpush1.msra.mxu0 0.0
    %701 = vmatprep.subr.mxu0 0.0
    %702 = vmatpush1.msra.mxu0 0.0
    %703 = vmatprep.subr.mxu0 0.0
    %704 = vmatpush1.msra.mxu0 0.0
    %705 = vmatprep.subr.mxu0 0.0
    %706 = vmatpush1.msra.mxu0 0.0
    %707 = vmatprep.subr.mxu0 0.0
    %708 = vmatpush1.msra.mxu0 0.0
    %709 = vmatprep.subr.mxu0 0.0
    %710 = vmatpush1.msra.mxu0 0.0
    %711 = vmatprep.subr.mxu0 0.0
    %712 = vmatpush1.msra.mxu0 0.0
    %713 = vmatprep.subr.mxu0 0.0
    %714 = vmatpush1.msra.mxu0 0.0
    %715 = vmatprep.subr.mxu0 0.0
    %716 = vmatpush1.msra.mxu0 0.0
    %717 = vmatprep.subr.mxu0 0.0
    %718 = vmatpush1.msra.mxu0 0.0
    %719 = vmatprep.subr.mxu0 0.0
    %720 = vmatpush1.msra.mxu0 0.0
    %721 = vmatprep.subr.mxu0 0.0
    %722 = vmatpush1.msra.mxu0 0.0
    %723 = vmatprep.subr.mxu0 0.0
    %724 = vmatpush1.msra.mxu0 0.0
    %725 = vmatprep.mubr.f32.mxu0 0.0
    %v726 = vand.u32 %v322, 4294901760
    %727 = vmatmul.mubr.f32.gmra.mrb[0].mxu0 %v726
    %v728 = vpop.f32.mrb[0].mxu0
    %v729 = vadd.f32 %v647, %v728
    %v730 = vpop.f32.mrb[0].mxu0
    %731 = vmatprep.mubr.f32.mxu0 0.0
    %v732 = vand.u32 %v325, 4294901760
    %733 = vmatmul.mubr.f32.gmra.mrb[0].mxu0 %v732
    %v734 = vpop.f32.mrb[0].mxu0
    %v735 = vadd.f32 %v655, %v734
    %v736 = vpop.f32.mrb[0].mxu0
    %737 = vdwg.mxu0
    %738 = vmatprep.subr.mxu0 0.0
    %v739 = vand.u32 %v287, 4294901760
    %740 = vmatpush1.msra.mxu0 %v739
    %741 = vmatprep.subr.mxu0 0.0
    %742 = vmatpush1.msra.mxu0 0.0
    %743 = vmatprep.subr.mxu0 0.0
    %744 = vmatpush1.msra.mxu0 0.0
    %745 = vmatprep.subr.mxu0 0.0
    %746 = vmatpush1.msra.mxu0 0.0
    %747 = vmatprep.subr.mxu0 0.0
    %748 = vmatpush1.msra.mxu0 0.0
    %749 = vmatprep.subr.mxu0 0.0
    %750 = vmatpush1.msra.mxu0 0.0
    %751 = vmatprep.subr.mxu0 0.0
    %752 = vmatpush1.msra.mxu0 0.0
    %753 = vmatprep.subr.mxu0 0.0
    %754 = vmatpush1.msra.mxu0 0.0
    %755 = vmatprep.subr.mxu0 0.0
    %756 = vmatpush1.msra.mxu0 0.0
    %757 = vmatprep.subr.mxu0 0.0
    %758 = vmatpush1.msra.mxu0 0.0
    %759 = vmatprep.subr.mxu0 0.0
    %760 = vmatpush1.msra.mxu0 0.0
    %761 = vmatprep.subr.mxu0 0.0
    %762 = vmatpush1.msra.mxu0 0.0
    %763 = vmatprep.subr.mxu0 0.0
    %764 = vmatpush1.msra.mxu0 0.0
    %765 = vmatprep.subr.mxu0 0.0
    %766 = vmatpush1.msra.mxu0 0.0
    %767 = vmatprep.subr.mxu0 0.0
    %768 = vmatpush1.msra.mxu0 0.0
    %769 = vmatprep.subr.mxu0 0.0
    %770 = vmatpush1.msra.mxu0 0.0
    %771 = vmatprep.subr.mxu0 0.0
    %772 = vmatpush1.msra.mxu0 0.0
    %773 = vmatprep.subr.mxu0 0.0
    %774 = vmatpush1.msra.mxu0 0.0
    %775 = vmatprep.subr.mxu0 0.0
    %776 = vmatpush1.msra.mxu0 0.0
    %777 = vmatprep.subr.mxu0 0.0
    %778 = vmatpush1.msra.mxu0 0.0
    %779 = vmatprep.subr.mxu0 0.0
    %780 = vmatpush1.msra.mxu0 0.0
    %781 = vmatprep.subr.mxu0 0.0
    %782 = vmatpush1.msra.mxu0 0.0
    %783 = vmatprep.subr.mxu0 0.0
    %784 = vmatpush1.msra.mxu0 0.0
    %785 = vmatprep.subr.mxu0 0.0
    %786 = vmatpush1.msra.mxu0 0.0
    %787 = vmatprep.subr.mxu0 0.0
    %788 = vmatpush1.msra.mxu0 0.0
    %789 = vmatprep.subr.mxu0 0.0
    %790 = vmatpush1.msra.mxu0 0.0
    %791 = vmatprep.subr.mxu0 0.0
    %792 = vmatpush1.msra.mxu0 0.0
    %793 = vmatprep.subr.mxu0 0.0
    %794 = vmatpush1.msra.mxu0 0.0
    %795 = vmatprep.subr.mxu0 0.0
    %796 = vmatpush1.msra.mxu0 0.0
    %797 = vmatprep.subr.mxu0 0.0
    %798 = vmatpush1.msra.mxu0 0.0
    %799 = vmatprep.subr.mxu0 0.0
    %800 = vmatpush1.msra.mxu0 0.0
    %801 = vmatprep.subr.mxu0 0.0
    %802 = vmatpush1.msra.mxu0 0.0
    %803 = vmatprep.mubr.f32.mxu0 0.0
    %v804 = vand.u32 %v322, 4294901760
    %805 = vmatmul.mubr.f32.gmra.mrb[0].mxu0 %v804
    %v806 = vpop.f32.mrb[0].mxu0
    %v807 = vadd.f32 %v729, %v806
    %v808 = vpop.f32.mrb[0].mxu0
    %809 = vmatprep.mubr.f32.mxu0 0.0
    %v810 = vand.u32 %v325, 4294901760
    %811 = vmatmul.mubr.f32.gmra.mrb[0].mxu0 %v810
    %v812 = vpop.f32.mrb[0].mxu0
    %v813 = vadd.f32 %v735, %v812
    %v814 = vpop.f32.mrb[0].mxu0
    %815 = vdwg.mxu0
    %v816 = vlaneseq
    %v817 = vand.u32 %v816, 127
    %vm818 = vcmp.eq.s32.totalorder %v308, %v817
    %vm819 = vcmp.eq.s32.totalorder %v309, %v817
    %v820 = vsel %vm818, %v807, 0.0
    %v821 = vsel %vm819, %v813, 0.0
    %v822 = vsel %vm283, %v820, 0.0
    %v823 = vsel %vm283, %v821, 0.0
    %v824 = vadd.f32 %v822, %v823
    %825 = vadd.xlane.f32.xlu0 %v824
    %v826 = vpop.xlane.xlu0 %825
    %v827 = vrot.slane %v826, 4
    %v828 = vadd.f32 %v826, %v827
    %v829 = vrot.slane %v828, 2
    %v830 = vadd.f32 %v828, %v829
    %v831 = vrot.slane %v830, 1
    %v832 = vadd.f32 %v830, %v831
    %s833 = vtos %v832
    %s834 = ssub.f32 %s305, %s833
    %v835 = vstv %s834
    %vm836 = vcmask 0
    %837 = vst.msk [vmem:[#allocation5] sm:$0x1] %vm836, %v835
    %838 = vst.msk [vmem:[#allocation6] sm:$0x1] %vm836, 0.0
    %p839 = scmp.eq.s32.totalorder 0, 0
    // Predicated region
    $region26: #{tpu_custom_call.1} parent=1 // pred_check
      %p840 = pneg %p839
    $region27: #{tpu_custom_call.1} parent=1 // pred_check_branch
      %842 = sbr.rel (%p840) target = $region29
    $region28: #{tpu_custom_call.1} parent=1 // pred_region
      %v843 = vmul.f32 %v38, %v38
      %v844 = vmul.f32 %v39, %v39
      %v845 = vmul.f32 %v40, %v40
      %v846 = vmul.f32 %v41, %v41
      %v847 = vsel %vm51, %v843, 0.0
      %v848 = vsel %vm51, %v844, 0.0
      %v849 = vadd.f32 %v847, %v848
      %v850 = vsel %vm51, %v845, 0.0
      %v851 = vadd.f32 %v849, %v850
      %v852 = vsel %vm51, %v846, 0.0
      %v853 = vadd.f32 %v851, %v852
      %854 = vadd.xlane.f32.xlu0 %v853
      %v855 = vpop.xlane.xlu0 %854
      %v856 = vrot.slane %v855, 4
      %v857 = vadd.f32 %v855, %v856
      %v858 = vrot.slane %v857, 2
      %v859 = vadd.f32 %v857, %v858
      %v860 = vrot.slane %v859, 1
      %v861 = vadd.f32 %v859, %v860
      %s862 = vtos %v861
      %v863 = vstv %s862
      %864 = vst.msk [vmem:[#allocation6] sm:$0x1] %vm836, %v863
    $region29: #{tpu_custom_call.1} parent=1 // pred_fallthru
      _
    // Predicated region
    $region30: #{tpu_custom_call.1} parent=1 // pred_check
      _
    $region31: #{tpu_custom_call.1} parent=1 // pred_check_branch
      %866 = sbr.rel (0) target = $region33
    $region32: #{tpu_custom_call.1} parent=1 // pred_region
      %s868 = ssub.s32 16, 16
      %869 = vsyncadd [#allocation4], %s868
      %s871 = sshll.u32 [#allocation5], 4
      %s872 = int_to_ptr.vmem [resolvable:$true] %s871
      %874 = dma.vmem_to_hbm [thread:$0]  %s872, 16, %s5, [#allocation4]
    $region33: #{tpu_custom_call.1} parent=1 // pred_fallthru
      _
    // Predicated region
    $region34: #{tpu_custom_call.1} parent=1 // pred_check
      _
    $region35: #{tpu_custom_call.1} parent=1 // pred_check_branch
      %876 = sbr.rel (0) target = $region37
    $region36: #{tpu_custom_call.1} parent=1 // pred_region
      %s878 = ssub.s32 16, 16
      %879 = vsyncadd [#allocation7], %s878
      %s881 = sshll.u32 [#allocation6], 4
      %s882 = int_to_ptr.vmem [resolvable:$true] %s881
      %884 = dma.vmem_to_hbm [thread:$0]  %s882, 16, %s6, [#allocation7]
    $region37: #{tpu_custom_call.1} parent=1 // pred_fallthru
      _
    // Predicated region
    $region38: #{tpu_custom_call.1} parent=1 // pred_check
      _
    $region39: #{tpu_custom_call.1} parent=1 // pred_check_branch
      %886 = sbr.rel (0) target = $region41
    $region40: #{tpu_custom_call.1} parent=1 // pred_region
      %887 = dma.done [#allocation4], 16
    $region41: #{tpu_custom_call.1} parent=1 // pred_fallthru
      _
    // Predicated region
    $region42: #{tpu_custom_call.1} parent=1 // pred_check
      _
    $region43: #{tpu_custom_call.1} parent=1 // pred_check_branch
      %889 = sbr.rel (0) target = $region45
    $region44: #{tpu_custom_call.1} parent=1 // pred_region
      %890 = dma.done [#allocation7], 16
    $region45: #{tpu_custom_call.1} parent=1 // pred_fallthru
      _
    %891 = vsyncpa [#allocation3], 1
    %892 = vsyncpa [#allocation4], 1
    %893 = vsyncpa [#allocation7], 1

</llo_original>
